<compile_context>
chip_gen: v7x
topology: tpu7x:2x2x1
jax: 0.10.0
libtpu: 0.0.40
codegen_flags: <defaults>
</compile_context>

<pallas_src>
import functools

import jax
import jax.numpy as jnp
from jax import lax
from jax.experimental import pallas as pl
from jax.experimental.pallas import tpu as pltpu


# ----------------------------------------------------------------------------
# Wrapper-side folding helpers (tiny weight-sized XLA ops, run once per call)
# ----------------------------------------------------------------------------
def _fold_bn(bn, eps=1e-5):
    s = bn["gamma"] / jnp.sqrt(bn["var"] + eps)
    b = bn["beta"] - bn["mean"] * s
    return s, b


def _dw_pw_matrices(wd, w_pw, W, Wo, stride):
    """M[kd*3+kh] of shape (W*C, Wo*Cout): folds the depthwise kw taps, the stride-W selection,
    W zero padding and the following 1x1x1 conv (w_pw already BN-scaled / shuffle-interleaved)."""
    C, Cout = w_pw.shape
    w_ids = jnp.arange(W)[:, None]
    ow_ids = jnp.arange(Wo)[None, :]
    out = []
    for kd in range(3):
        for kh in range(3):
            M = jnp.zeros((W * C, Wo * Cout), jnp.float32)
            for kw in range(3):
                sel = (w_ids == stride * ow_ids + kw - 1).astype(jnp.float32)   # (W, Wo)
                M = M + jnp.kron(sel, wd[kd, kh, kw][:, None] * w_pw)
            out.append(M)
    return jnp.stack(out)                                                        # (9, W*C, Wo*Cout)


def _sel_matrix(D, H, Do, Ho, stride):
    """S_cat[(od*Ho+oh), (kd*3+kh)*D*H + d*H + h] = 1 iff d == stride*od + kd - 1 and
    h == stride*oh + kh - 1 (missing matches implement the D/H zero padding + stride)."""
    od = jnp.arange(Do)[:, None]
    oh = jnp.arange(Ho)[:, None]
    d = jnp.arange(D)[None, :]
    h = jnp.arange(H)[None, :]
    blocks = []
    for kd in range(3):
        sel_d = (d == stride * od + kd - 1).astype(jnp.float32)                  # (Do, D)
        for kh in range(3):
            sel_h = (h == stride * oh + kh - 1).astype(jnp.float32)              # (Ho, H)
            blocks.append(jnp.kron(sel_d, sel_h))                                # (Do*Ho, D*H)
    return jnp.concatenate(blocks, axis=1)                                       # (Do*Ho, 9*D*H)


# ----------------------------------------------------------------------------
# Fused kernels (grid over batch; everything stays in VMEM / vregs per step)
# ----------------------------------------------------------------------------
def _block_s1_kernel(x_ref, w0_ref, b0_ref, p_ref, m_ref, s_ref, bc_ref,
                     o_ref, t_ref, *, DH):
    X = x_ref[0]                                                  # (DH, W*C) bf16
    # Stage A: branch-2 first 1x1x1 conv + BN + ReLU — one full-slab MXU dot (branch split folded
    # into zero rows of w0).
    mid = jnp.maximum(
        jnp.dot(X, w0_ref[...], preferred_element_type=jnp.float32) + b0_ref[...],
        0.0).astype(jnp.bfloat16)                                 # (DH, W*Cmid)
    # Stage B: depthwise 3x3x3 + BN fused with the second 1x1x1 conv + BN via 9 (kd,kh) tap
    # matrices; the single selection matmul folds the kd/kh shifts and zero padding.
    for i in range(9):
        t_ref[pl.ds(i * DH, DH), :] = jnp.dot(mid, m_ref[i],
                                              preferred_element_type=jnp.float32)
    acc = jnp.dot(s_ref[...], t_ref[...], preferred_element_type=jnp.float32)
    # Disjointness invariant: M/bc are zero on even (branch-1) columns, P on odd (branch-2)
    # columns, so relu(acc + bc) + X @ P is an exact concat + channel_shuffle.
    y2 = jnp.maximum(acc + bc_ref[...], 0.0)                      # branch 2 -> odd shuffled cols
    y1 = jnp.dot(X, p_ref[...], preferred_element_type=jnp.float32)  # passthrough -> even cols
    o_ref[0] = y1 + y2


def _block_s2_kernel(x_ref, w0_ref, b0_ref, m1_ref, m2_ref, s_ref, bc_ref,
                     o_ref, t_ref, *, DH):
    X = x_ref[0]                                                  # (DH, W*Cin) bf16
    # Stage A: branch-2 first 1x1x1 conv + BN + ReLU.
    mid = jnp.maximum(
        jnp.dot(X, w0_ref[...], preferred_element_type=jnp.float32) + b0_ref[...],
        0.0).astype(jnp.bfloat16)                                 # (DH, W*Cmid)
    # Stage B: both branches' strided depthwise + BN + 1x1x1 conv + BN, concat + shuffle.
    # Branch 1 operates on the raw input (M1), branch 2 on the Stage-A output (M2); the selection
    # matmul folds kd/kh shifts, zero padding and the stride-2 D/H subsampling.
    for i in range(9):
        t_ref[pl.ds(i * DH, DH), :] = (
            jnp.dot(X, m1_ref[i], preferred_element_type=jnp.float32)
            + jnp.dot(mid, m2_ref[i], preferred_element_type=jnp.float32))
    acc = jnp.dot(s_ref[...], t_ref[...], preferred_element_type=jnp.float32)
    o_ref[0] = jnp.maximum(acc + bc_ref[...], 0.0)


# ----------------------------------------------------------------------------
# Module
# ----------------------------------------------------------------------------
class InvertedResidualPallas:
    def __init__(self, inp, oup, stride, key):
        assert stride in [1, 2]
        self.inp, self.oup, self.stride = inp, oup, stride
        oup_inc = oup // 2
        self.oup_inc = oup_inc
        keys = iter(jax.random.split(key, 32))

        def pw(cin, cout):
            return jax.random.normal(next(keys), (cin, cout), jnp.float32) * 0.2

        def dw(c):
            return jax.random.normal(next(keys), (3, 3, 3, c), jnp.float32) * 0.2

        def bn(c):
            return dict(
                gamma=jax.random.uniform(next(keys), (c,), jnp.float32, 0.5, 1.5),
                beta=jax.random.normal(next(keys), (c,), jnp.float32) * 0.1,
                mean=jax.random.normal(next(keys), (c,), jnp.float32) * 0.1,
                var=jax.random.uniform(next(keys), (c,), jnp.float32, 0.5, 1.5),
            )

        if stride == 1:
            self.banch2 = dict(pw0=pw(oup_inc, oup_inc), bn0=bn(oup_inc),
                               dw1=dw(oup_inc), bn1=bn(oup_inc),
                               pw2=pw(oup_inc, oup_inc), bn2=bn(oup_inc))
        else:
            self.banch1 = dict(dw0=dw(inp), bn0=bn(inp),
                               pw1=pw(inp, oup_inc), bn1=bn(oup_inc))
            self.banch2 = dict(pw0=pw(inp, oup_inc), bn0=bn(oup_inc),
                               dw1=dw(oup_inc), bn1=bn(oup_inc),
                               pw2=pw(oup_inc, oup_inc), bn2=bn(oup_inc))

    # ---------------- stride = 1 fused forward ----------------
    def _forward_s1(self, xf, D, H, W, C):
        p = self.banch2
        oup, Cmid = self.oup, self.oup_inc
        N, DH, L = xf.shape
        OUTL = W * oup

        s0, b0 = _fold_bn(p["bn0"])
        s1, b1 = _fold_bn(p["bn1"]); wd = p["dw1"] * s1
        s2, b2 = _fold_bn(p["bn2"])
        # shuffled column layout: final channel 2k <- branch1[k] (passthrough), 2k+1 <- branch2[k]
        w2e = jnp.zeros((Cmid, oup), jnp.float32).at[:, 1::2].set(p["pw2"] * s2[None, :])
        b2e = jnp.zeros((oup,), jnp.float32).at[1::2].set(b2)
        # branch split folded into the first 1x1x1 conv: branch-1 channel rows are zero
        w0_full = jnp.zeros((C, Cmid), jnp.float32).at[C // 2:, :].set(p["pw0"] * s0[None, :])
        w0bd = jnp.kron(jnp.eye(W, dtype=jnp.float32), w0_full)            # (W*C, W*Cmid)
        b0t = jnp.tile(b0, W)[None, :]                                      # (1, W*Cmid)
        M = _dw_pw_matrices(wd, w2e, W, W, 1)                               # (9, W*Cmid, W*oup)
        bc = jnp.tile(b1 @ w2e + b2e, W)[None, :]                           # (1, W*oup)
        S = _sel_matrix(D, H, D, H, 1)                                      # (D*H, 9*D*H)
        # passthrough (branch 1) -> even shuffled columns, as a lane-permutation matrix
        E = jnp.zeros((C, oup), jnp.float32)
        E = E.at[jnp.arange(C // 2), 2 * jnp.arange(C // 2)].set(1.0)
        P = jnp.kron(jnp.eye(W, dtype=jnp.float32), E)                      # (W*C, W*oup)

        w0bd16 = w0bd.astype(jnp.bfloat16)
        M16 = M.astype(jnp.bfloat16)
        P16 = P.astype(jnp.bfloat16)

        kern = functools.partial(_block_s1_kernel, DH=DH)
        flops = 2 * N * (DH * L * W * Cmid + 9 * DH * W * Cmid * OUTL
                         + DH * 9 * DH * OUTL + DH * L * OUTL)
        bytes_acc = (2 * int(xf.size) + 4 * N * DH * OUTL
                     + 2 * (int(w0bd.size) + int(M.size) + int(P.size)) + 4 * int(S.size))
        return pl.pallas_call(
            kern,
            out_shape=jax.ShapeDtypeStruct((N, DH, OUTL), jnp.float32),
            grid_spec=pltpu.PrefetchScalarGridSpec(
                num_scalar_prefetch=0,
                grid=(N,),
                in_specs=[
                    pl.BlockSpec((1, DH, L), lambda n: (n, 0, 0)),
                    pl.BlockSpec(w0bd16.shape, lambda n: (0, 0)),
                    pl.BlockSpec(b0t.shape, lambda n: (0, 0)),
                    pl.BlockSpec(P16.shape, lambda n: (0, 0)),
                    pl.BlockSpec(M16.shape, lambda n: (0, 0, 0)),
                    pl.BlockSpec(S.shape, lambda n: (0, 0)),
                    pl.BlockSpec(bc.shape, lambda n: (0, 0)),
                ],
                out_specs=pl.BlockSpec((1, DH, OUTL), lambda n: (n, 0, 0)),
                scratch_shapes=[pltpu.VMEM((9 * DH, OUTL), jnp.float32)],
            ),
            compiler_params=pltpu.CompilerParams(
                dimension_semantics=("parallel",),
                vmem_limit_bytes=32 * 1024 * 1024,
            ),
            cost_estimate=pl.CostEstimate(flops=int(flops), transcendentals=0,
                                          bytes_accessed=int(bytes_acc)),
        )(xf, w0bd16, b0t, P16, M16, S, bc)

    # ---------------- stride = 2 fused forward ----------------
    def _forward_s2(self, xf, D, H, W):
        p1, p2 = self.banch1, self.banch2
        oup, Cmid, Cin = self.oup, self.oup_inc, self.inp
        Do, Ho, Wo = (D - 1) // 2 + 1, (H - 1) // 2 + 1, (W - 1) // 2 + 1
        N, DH, Lx = xf.shape
        OUTL = Wo * oup

        # branch 1: depthwise(inp)+BN -> 1x1(inp->oup_inc)+BN+ReLU   (even shuffled columns)
        s10, b10 = _fold_bn(p1["bn0"]); wd1 = p1["dw0"] * s10
        s11, b11 = _fold_bn(p1["bn1"])
        w1e = jnp.zeros((Cin, oup), jnp.float32).at[:, 0::2].set(p1["pw1"] * s11[None, :])
        b11e = jnp.zeros((oup,), jnp.float32).at[0::2].set(b11)
        # branch 2: 1x1(inp->oup_inc)+BN+ReLU -> depthwise+BN -> 1x1+BN+ReLU (odd shuffled columns)
        s20, b20 = _fold_bn(p2["bn0"]); w20 = p2["pw0"] * s20[None, :]
        s21, b21 = _fold_bn(p2["bn1"]); wd2 = p2["dw1"] * s21
        s22, b22 = _fold_bn(p2["bn2"])
        w22e = jnp.zeros((Cmid, oup), jnp.float32).at[:, 1::2].set(p2["pw2"] * s22[None, :])
        b22e = jnp.zeros((oup,), jnp.float32).at[1::2].set(b22)

        w0bd = jnp.kron(jnp.eye(W, dtype=jnp.float32), w20)                 # (W*Cin, W*Cmid)
        b0t = jnp.tile(b20, W)[None, :]                                     # (1, W*Cmid)
        M1 = _dw_pw_matrices(wd1, w1e, W, Wo, 2)                            # (9, W*Cin,  Wo*oup)
        M2 = _dw_pw_matrices(wd2, w22e, W, Wo, 2)                           # (9, W*Cmid, Wo*oup)
        bc = (jnp.tile(b10 @ w1e + b11e, Wo) + jnp.tile(b21 @ w22e + b22e, Wo))[None, :]
        S = _sel_matrix(D, H, Do, Ho, 2)                                    # (Do*Ho, 9*D*H)

        w0bd16 = w0bd.astype(jnp.bfloat16)
        M1_16 = M1.astype(jnp.bfloat16)
        M2_16 = M2.astype(jnp.bfloat16)

        kern = functools.partial(_block_s2_kernel, DH=DH)
        flops = 2 * N * (DH * Lx * W * Cmid + 9 * DH * (Lx + W * Cmid) * OUTL
                         + Do * Ho * 9 * DH * OUTL)
        bytes_acc = (2 * int(xf.size) + 4 * N * Do * Ho * OUTL
                     + 2 * (int(w0bd.size) + int(M1.size) + int(M2.size)) + 4 * int(S.size))
        return pl.pallas_call(
            kern,
            out_shape=jax.ShapeDtypeStruct((N, Do * Ho, OUTL), jnp.float32),
            grid_spec=pltpu.PrefetchScalarGridSpec(
                num_scalar_prefetch=0,
                grid=(N,),
                in_specs=[
                    pl.BlockSpec((1, DH, Lx), lambda n: (n, 0, 0)),
                    pl.BlockSpec(w0bd16.shape, lambda n: (0, 0)),
                    pl.BlockSpec(b0t.shape, lambda n: (0, 0)),
                    pl.BlockSpec(M1_16.shape, lambda n: (0, 0, 0)),
                    pl.BlockSpec(M2_16.shape, lambda n: (0, 0, 0)),
                    pl.BlockSpec(S.shape, lambda n: (0, 0)),
                    pl.BlockSpec(bc.shape, lambda n: (0, 0)),
                ],
                out_specs=pl.BlockSpec((1, Do * Ho, OUTL), lambda n: (n, 0, 0)),
                scratch_shapes=[pltpu.VMEM((9 * DH, OUTL), jnp.float32)],
            ),
            compiler_params=pltpu.CompilerParams(
                dimension_semantics=("parallel",),
                vmem_limit_bytes=32 * 1024 * 1024,
            ),
            cost_estimate=pl.CostEstimate(flops=int(flops), transcendentals=0,
                                          bytes_accessed=int(bytes_acc)),
        )(xf, w0bd16, b0t, M1_16, M2_16, S, bc)

    # ---------------- public forward (NCDHW in/out) ----------------
    def __call__(self, x_ncdhw):
        x = jnp.transpose(x_ncdhw, (0, 2, 3, 4, 1))              # NCDHW -> NDHWC
        N, D, H, W, C = x.shape
        xf = x.reshape(N, D * H, W * C).astype(jnp.bfloat16)     # bf16 MXU operands (DMA halved)
        if self.stride == 1:
            out = self._forward_s1(xf, D, H, W, C)               # (N, D*H, W*oup), pre-shuffled
            Do, Ho, Wo = D, H, W
        else:
            out = self._forward_s2(xf, D, H, W)                  # (N, Do*Ho, Wo*oup), pre-shuffled
            Do, Ho, Wo = (D - 1) // 2 + 1, (H - 1) // 2 + 1, (W - 1) // 2 + 1
        out = out.reshape(N, Do, Ho, Wo, self.oup)               # split lanes -> (Wo, oup)
        return jnp.transpose(out, (0, 4, 1, 2, 3))               # NDHWC -> NCDHW

    # ---------------- pure-JAX NCDHW reference (for the correctness check) ----------------
    @staticmethod
    def _ref_bn(x, bn, eps=1e-5):
        r = lambda v: v[None, :, None, None, None]
        return (x - r(bn["mean"])) / jnp.sqrt(r(bn["var"]) + eps) * r(bn["gamma"]) + r(bn["beta"])

    def _ref_pw(self, x, w_io, bn, relu):
        cin, cout = w_io.shape
        w = w_io.T.reshape(cout, cin, 1, 1, 1)
        y = lax.conv_general_dilated(x, w, (1, 1, 1), [(0, 0)] * 3,
                                     dimension_numbers=("NCDHW", "OIDHW", "NCDHW"))
        y = self._ref_bn(y, bn)
        return jnp.maximum(y, 0.0) if relu else y

    def _ref_dw(self, x, w_dhwc, bn, relu):
        c = w_dhwc.shape[-1]
        w = jnp.transpose(w_dhwc, (3, 0, 1, 2)).reshape(c, 1, 3, 3, 3)
        y = lax.conv_general_dilated(x, w, (self.stride,) * 3, [(1, 1)] * 3,
                                     dimension_numbers=("NCDHW", "OIDHW", "NCDHW"),
                                     feature_group_count=c)
        y = self._ref_bn(y, bn)
        return jnp.maximum(y, 0.0) if relu else y

    def reference(self, x):
        def b2(z):
            p = self.banch2
            z = self._ref_pw(z, p["pw0"], p["bn0"], True)
            z = self._ref_dw(z, p["dw1"], p["bn1"], False)
            return self._ref_pw(z, p["pw2"], p["bn2"], True)

        if self.stride == 1:
            c = x.shape[1]
            x1, x2 = x[:, : c // 2], x[:, c // 2:]
            out = jnp.concatenate([x1, b2(x2)], axis=1)
        else:
            p = self.banch1
            o1 = self._ref_dw(x, p["dw0"], p["bn0"], False)
            o1 = self._ref_pw(o1, p["pw1"], p["bn1"], True)
            out = jnp.concatenate([o1, b2(x)], axis=1)
        n, c, d, h, w = out.shape
        out = out.reshape(n, 2, c // 2, d, h, w).transpose(0, 2, 1, 3, 4, 5).reshape(n, c, d, h, w)
        return out


# ----------------------------------------------------------------------------
if __name__ == "__main__":
    key = jax.random.PRNGKey(0)
    x = jax.random.normal(key, (2, 16, 4, 8, 8), jnp.float32)  # NCDHW

    # stride = 1 (inp == oup)
    m1 = InvertedResidualPallas(16, 16, 1, jax.random.PRNGKey(1))
    y1 = jax.block_until_ready(jax.jit(m1.__call__)(x))
    r1 = m1.reference(x)
    assert y1.shape == (2, 16, 4, 8, 8), y1.shape
    # tolerance covers bf16 MXU operands (f32 accumulation / epilogue)
    assert jnp.allclose(y1, r1, atol=5e-2, rtol=5e-2), float(jnp.max(jnp.abs(y1 - r1)))

    # stride = 2 (downsampling block)
    m2 = InvertedResidualPallas(16, 32, 2, jax.random.PRNGKey(2))
    y2 = jax.block_until_ready(jax.jit(m2.__call__)(x))
    r2 = m2.reference(x)
    assert y2.shape == (2, 32, 2, 4, 4), y2.shape
    assert jnp.allclose(y2, r2, atol=5e-2, rtol=5e-2), float(jnp.max(jnp.abs(y2 - r2)))

    print("KERNEL_OK")
</pallas_src>

<mosaic_0001>
module attributes {stable_mosaic.version = 11 : i64} {
  func.func @_block_s1_kernel(%arg0: i32, %arg1: memref<1x32x128xbf16, #tpu.memory_space<vmem>>, %arg2: memref<128x64xbf16, #tpu.memory_space<vmem>>, %arg3: memref<1x64xf32, #tpu.memory_space<vmem>>, %arg4: memref<128x128xbf16, #tpu.memory_space<vmem>>, %arg5: memref<9x64x128xbf16, #tpu.memory_space<vmem>>, %arg6: memref<32x288xf32, #tpu.memory_space<vmem>>, %arg7: memref<1x128xf32, #tpu.memory_space<vmem>>, %arg8: memref<1x32x128xf32, #tpu.memory_space<vmem>>, %arg9: memref<288x128xf32, #tpu.memory_space<vmem>>) attributes {dimension_semantics = [#tpu.dimension_semantics<parallel>], iteration_bounds = array<i64: 2>, scalar_prefetch = 0 : i64, scratch_operands = 1 : i64, tpu.core_type = #tpu.core_type<tc>, window_params = [{transform_indices = @transform_0, window_bounds = array<i64: 1, 32, 128>}, {pipeline_mode = #tpu.pipeline_mode<synchronous>, transform_indices = @transform_1, window_bounds = array<i64: 128, 64>}, {pipeline_mode = #tpu.pipeline_mode<synchronous>, transform_indices = @transform_2, window_bounds = array<i64: 1, 64>}, {pipeline_mode = #tpu.pipeline_mode<synchronous>, transform_indices = @transform_3, window_bounds = array<i64: 128, 128>}, {pipeline_mode = #tpu.pipeline_mode<synchronous>, transform_indices = @transform_4, window_bounds = array<i64: 9, 64, 128>}, {pipeline_mode = #tpu.pipeline_mode<synchronous>, transform_indices = @transform_5, window_bounds = array<i64: 32, 288>}, {pipeline_mode = #tpu.pipeline_mode<synchronous>, transform_indices = @transform_6, window_bounds = array<i64: 1, 128>}, {transform_indices = @transform_7, window_bounds = array<i64: 1, 32, 128>}]} {
    %c0 = arith.constant 0 : index
    %c0_0 = arith.constant 0 : index
    %c0_1 = arith.constant 0 : index
    %0 = vector.load %arg1[%c0, %c0_0, %c0_1] : memref<1x32x128xbf16, #tpu.memory_space<vmem>>, vector<1x32x128xbf16>
    %1 = vector.shape_cast %0 : vector<1x32x128xbf16> to vector<32x128xbf16>
    %c0_2 = arith.constant 0 : index
    %c0_3 = arith.constant 0 : index
    %2 = vector.load %arg2[%c0_2, %c0_3] : memref<128x64xbf16, #tpu.memory_space<vmem>>, vector<128x64xbf16>
    %cst = arith.constant dense<0.000000e+00> : vector<32x64xf32>
    %3 = tpu.matmul %1, %2, %cst {dimension_numbers = #tpu.dot_dimension_numbers<[1], [0], [0], [1], [0, 0, 1, 1], [], []>} : vector<32x128xbf16>, vector<128x64xbf16>, vector<32x64xf32> -> vector<32x64xf32>
    %c0_4 = arith.constant 0 : index
    %c0_5 = arith.constant 0 : index
    %4 = vector.load %arg3[%c0_4, %c0_5] : memref<1x64xf32, #tpu.memory_space<vmem>>, vector<1x64xf32>
    %5 = vector.broadcast %4 : vector<1x64xf32> to vector<32x64xf32>
    %6 = arith.addf %3, %5 : vector<32x64xf32>
    %cst_6 = arith.constant 0.000000e+00 : f32
    %7 = vector.broadcast %cst_6 : f32 to vector<32x64xf32>
    %8 = arith.maximumf %6, %7 : vector<32x64xf32>
    %9 = arith.truncf %8 : vector<32x64xf32> to vector<32x64xbf16>
    %c0_7 = arith.constant 0 : index
    %c0_8 = arith.constant 0 : index
    %c0_9 = arith.constant 0 : index
    %10 = vector.load %arg5[%c0_7, %c0_8, %c0_9] : memref<9x64x128xbf16, #tpu.memory_space<vmem>>, vector<1x64x128xbf16>
    %11 = vector.shape_cast %10 : vector<1x64x128xbf16> to vector<64x128xbf16>
    %cst_10 = arith.constant dense<0.000000e+00> : vector<32x128xf32>
    %12 = tpu.matmul %9, %11, %cst_10 {dimension_numbers = #tpu.dot_dimension_numbers<[1], [0], [0], [1], [0, 0, 1, 1], [], []>} : vector<32x64xbf16>, vector<64x128xbf16>, vector<32x128xf32> -> vector<32x128xf32>
    %c0_11 = arith.constant 0 : index
    %c0_12 = arith.constant 0 : index
    %13 = vector.load %arg9[%c0_11, %c0_12] : memref<288x128xf32, #tpu.memory_space<vmem>>, vector<32x128xf32>
    tpu.vector_store %arg9[%c0_11, %c0_12], %12 {strides = array<i32>} : memref<288x128xf32, #tpu.memory_space<vmem>>, vector<32x128xf32>,
    %c1 = arith.constant 1 : index
    %c0_13 = arith.constant 0 : index
    %c0_14 = arith.constant 0 : index
    %14 = vector.load %arg5[%c1, %c0_13, %c0_14] : memref<9x64x128xbf16, #tpu.memory_space<vmem>>, vector<1x64x128xbf16>
    %15 = vector.shape_cast %14 : vector<1x64x128xbf16> to vector<64x128xbf16>
    %cst_15 = arith.constant dense<0.000000e+00> : vector<32x128xf32>
    %16 = tpu.matmul %9, %15, %cst_15 {dimension_numbers = #tpu.dot_dimension_numbers<[1], [0], [0], [1], [0, 0, 1, 1], [], []>} : vector<32x64xbf16>, vector<64x128xbf16>, vector<32x128xf32> -> vector<32x128xf32>
    %c32 = arith.constant 32 : index
    %c0_16 = arith.constant 0 : index
    %17 = vector.load %arg9[%c32, %c0_16] : memref<288x128xf32, #tpu.memory_space<vmem>>, vector<32x128xf32>
    tpu.vector_store %arg9[%c32, %c0_16], %16 {strides = array<i32>} : memref<288x128xf32, #tpu.memory_space<vmem>>, vector<32x128xf32>,
    %c2 = arith.constant 2 : index
    %c0_17 = arith.constant 0 : index
    %c0_18 = arith.constant 0 : index
    %18 = vector.load %arg5[%c2, %c0_17, %c0_18] : memref<9x64x128xbf16, #tpu.memory_space<vmem>>, vector<1x64x128xbf16>
    %19 = vector.shape_cast %18 : vector<1x64x128xbf16> to vector<64x128xbf16>
    %cst_19 = arith.constant dense<0.000000e+00> : vector<32x128xf32>
    %20 = tpu.matmul %9, %19, %cst_19 {dimension_numbers = #tpu.dot_dimension_numbers<[1], [0], [0], [1], [0, 0, 1, 1], [], []>} : vector<32x64xbf16>, vector<64x128xbf16>, vector<32x128xf32> -> vector<32x128xf32>
    %c64 = arith.constant 64 : index
    %c0_20 = arith.constant 0 : index
    %21 = vector.load %arg9[%c64, %c0_20] : memref<288x128xf32, #tpu.memory_space<vmem>>, vector<32x128xf32>
    tpu.vector_store %arg9[%c64, %c0_20], %20 {strides = array<i32>} : memref<288x128xf32, #tpu.memory_space<vmem>>, vector<32x128xf32>,
    %c3 = arith.constant 3 : index
    %c0_21 = arith.constant 0 : index
    %c0_22 = arith.constant 0 : index
    %22 = vector.load %arg5[%c3, %c0_21, %c0_22] : memref<9x64x128xbf16, #tpu.memory_space<vmem>>, vector<1x64x128xbf16>
    %23 = vector.shape_cast %22 : vector<1x64x128xbf16> to vector<64x128xbf16>
    %cst_23 = arith.constant dense<0.000000e+00> : vector<32x128xf32>
    %24 = tpu.matmul %9, %23, %cst_23 {dimension_numbers = #tpu.dot_dimension_numbers<[1], [0], [0], [1], [0, 0, 1, 1], [], []>} : vector<32x64xbf16>, vector<64x128xbf16>, vector<32x128xf32> -> vector<32x128xf32>
    %c96 = arith.constant 96 : index
    %c0_24 = arith.constant 0 : index
    %25 = vector.load %arg9[%c96, %c0_24] : memref<288x128xf32, #tpu.memory_space<vmem>>, vector<32x128xf32>
    tpu.vector_store %arg9[%c96, %c0_24], %24 {strides = array<i32>} : memref<288x128xf32, #tpu.memory_space<vmem>>, vector<32x128xf32>,
    %c4 = arith.constant 4 : index
    %c0_25 = arith.constant 0 : index
    %c0_26 = arith.constant 0 : index
    %26 = vector.load %arg5[%c4, %c0_25, %c0_26] : memref<9x64x128xbf16, #tpu.memory_space<vmem>>, vector<1x64x128xbf16>
    %27 = vector.shape_cast %26 : vector<1x64x128xbf16> to vector<64x128xbf16>
    %cst_27 = arith.constant dense<0.000000e+00> : vector<32x128xf32>
    %28 = tpu.matmul %9, %27, %cst_27 {dimension_numbers = #tpu.dot_dimension_numbers<[1], [0], [0], [1], [0, 0, 1, 1], [], []>} : vector<32x64xbf16>, vector<64x128xbf16>, vector<32x128xf32> -> vector<32x128xf32>
    %c128 = arith.constant 128 : index
    %c0_28 = arith.constant 0 : index
    %29 = vector.load %arg9[%c128, %c0_28] : memref<288x128xf32, #tpu.memory_space<vmem>>, vector<32x128xf32>
    tpu.vector_store %arg9[%c128, %c0_28], %28 {strides = array<i32>} : memref<288x128xf32, #tpu.memory_space<vmem>>, vector<32x128xf32>,
    %c5 = arith.constant 5 : index
    %c0_29 = arith.constant 0 : index
    %c0_30 = arith.constant 0 : index
    %30 = vector.load %arg5[%c5, %c0_29, %c0_30] : memref<9x64x128xbf16, #tpu.memory_space<vmem>>, vector<1x64x128xbf16>
    %31 = vector.shape_cast %30 : vector<1x64x128xbf16> to vector<64x128xbf16>
    %cst_31 = arith.constant dense<0.000000e+00> : vector<32x128xf32>
    %32 = tpu.matmul %9, %31, %cst_31 {dimension_numbers = #tpu.dot_dimension_numbers<[1], [0], [0], [1], [0, 0, 1, 1], [], []>} : vector<32x64xbf16>, vector<64x128xbf16>, vector<32x128xf32> -> vector<32x128xf32>
    %c160 = arith.constant 160 : index
    %c0_32 = arith.constant 0 : index
    %33 = vector.load %arg9[%c160, %c0_32] : memref<288x128xf32, #tpu.memory_space<vmem>>, vector<32x128xf32>
    tpu.vector_store %arg9[%c160, %c0_32], %32 {strides = array<i32>} : memref<288x128xf32, #tpu.memory_space<vmem>>, vector<32x128xf32>,
    %c6 = arith.constant 6 : index
    %c0_33 = arith.constant 0 : index
    %c0_34 = arith.constant 0 : index
    %34 = vector.load %arg5[%c6, %c0_33, %c0_34] : memref<9x64x128xbf16, #tpu.memory_space<vmem>>, vector<1x64x128xbf16>
    %35 = vector.shape_cast %34 : vector<1x64x128xbf16> to vector<64x128xbf16>
    %cst_35 = arith.constant dense<0.000000e+00> : vector<32x128xf32>
    %36 = tpu.matmul %9, %35, %cst_35 {dimension_numbers = #tpu.dot_dimension_numbers<[1], [0], [0], [1], [0, 0, 1, 1], [], []>} : vector<32x64xbf16>, vector<64x128xbf16>, vector<32x128xf32> -> vector<32x128xf32>
    %c192 = arith.constant 192 : index
    %c0_36 = arith.constant 0 : index
    %37 = vector.load %arg9[%c192, %c0_36] : memref<288x128xf32, #tpu.memory_space<vmem>>, vector<32x128xf32>
    tpu.vector_store %arg9[%c192, %c0_36], %36 {strides = array<i32>} : memref<288x128xf32, #tpu.memory_space<vmem>>, vector<32x128xf32>,
    %c7 = arith.constant 7 : index
    %c0_37 = arith.constant 0 : index
    %c0_38 = arith.constant 0 : index
    %38 = vector.load %arg5[%c7, %c0_37, %c0_38] : memref<9x64x128xbf16, #tpu.memory_space<vmem>>, vector<1x64x128xbf16>
    %39 = vector.shape_cast %38 : vector<1x64x128xbf16> to vector<64x128xbf16>
    %cst_39 = arith.constant dense<0.000000e+00> : vector<32x128xf32>
    %40 = tpu.matmul %9, %39, %cst_39 {dimension_numbers = #tpu.dot_dimension_numbers<[1], [0], [0], [1], [0, 0, 1, 1], [], []>} : vector<32x64xbf16>, vector<64x128xbf16>, vector<32x128xf32> -> vector<32x128xf32>
    %c224 = arith.constant 224 : index
    %c0_40 = arith.constant 0 : index
    %41 = vector.load %arg9[%c224, %c0_40] : memref<288x128xf32, #tpu.memory_space<vmem>>, vector<32x128xf32>
    tpu.vector_store %arg9[%c224, %c0_40], %40 {strides = array<i32>} : memref<288x128xf32, #tpu.memory_space<vmem>>, vector<32x128xf32>,
    %c8 = arith.constant 8 : index
    %c0_41 = arith.constant 0 : index
    %c0_42 = arith.constant 0 : index
    %42 = vector.load %arg5[%c8, %c0_41, %c0_42] : memref<9x64x128xbf16, #tpu.memory_space<vmem>>, vector<1x64x128xbf16>
    %43 = vector.shape_cast %42 : vector<1x64x128xbf16> to vector<64x128xbf16>
    %cst_43 = arith.constant dense<0.000000e+00> : vector<32x128xf32>
    %44 = tpu.matmul %9, %43, %cst_43 {dimension_numbers = #tpu.dot_dimension_numbers<[1], [0], [0], [1], [0, 0, 1, 1], [], []>} : vector<32x64xbf16>, vector<64x128xbf16>, vector<32x128xf32> -> vector<32x128xf32>
    %c256 = arith.constant 256 : index
    %c0_44 = arith.constant 0 : index
    %45 = vector.load %arg9[%c256, %c0_44] : memref<288x128xf32, #tpu.memory_space<vmem>>, vector<32x128xf32>
    tpu.vector_store %arg9[%c256, %c0_44], %44 {strides = array<i32>} : memref<288x128xf32, #tpu.memory_space<vmem>>, vector<32x128xf32>,
    %c0_45 = arith.constant 0 : index
    %c0_46 = arith.constant 0 : index
    %46 = vector.load %arg6[%c0_45, %c0_46] : memref<32x288xf32, #tpu.memory_space<vmem>>, vector<32x288xf32>
    %c0_47 = arith.constant 0 : index
    %c0_48 = arith.constant 0 : index
    %47 = vector.load %arg9[%c0_47, %c0_48] : memref<288x128xf32, #tpu.memory_space<vmem>>, vector<288x128xf32>
    %cst_49 = arith.constant dense<0.000000e+00> : vector<32x128xf32>
    %48 = tpu.matmul %46, %47, %cst_49 {dimension_numbers = #tpu.dot_dimension_numbers<[1], [0], [0], [1], [0, 0, 1, 1], [], []>} : vector<32x288xf32>, vector<288x128xf32>, vector<32x128xf32> -> vector<32x128xf32>
    %c0_50 = arith.constant 0 : index
    %c0_51 = arith.constant 0 : index
    %49 = vector.load %arg7[%c0_50, %c0_51] : memref<1x128xf32, #tpu.memory_space<vmem>>, vector<1x128xf32>
    %50 = vector.broadcast %49 : vector<1x128xf32> to vector<32x128xf32>
    %51 = arith.addf %48, %50 : vector<32x128xf32>
    %cst_52 = arith.constant 0.000000e+00 : f32
    %52 = vector.broadcast %cst_52 : f32 to vector<32x128xf32>
    %53 = arith.maximumf %51, %52 : vector<32x128xf32>
    %c0_53 = arith.constant 0 : index
    %c0_54 = arith.constant 0 : index
    %54 = vector.load %arg4[%c0_53, %c0_54] : memref<128x128xbf16, #tpu.memory_space<vmem>>, vector<128x128xbf16>
    %cst_55 = arith.constant dense<0.000000e+00> : vector<32x128xf32>
    %55 = tpu.matmul %1, %54, %cst_55 {dimension_numbers = #tpu.dot_dimension_numbers<[1], [0], [0], [1], [0, 0, 1, 1], [], []>} : vector<32x128xbf16>, vector<128x128xbf16>, vector<32x128xf32> -> vector<32x128xf32>
    %56 = arith.addf %55, %53 : vector<32x128xf32>
    %c0_56 = arith.constant 0 : index
    %c0_57 = arith.constant 0 : index
    %c0_58 = arith.constant 0 : index
    %57 = vector.load %arg8[%c0_56, %c0_57, %c0_58] : memref<1x32x128xf32, #tpu.memory_space<vmem>>, vector<1x32x128xf32>
    %58 = vector.shape_cast %57 : vector<1x32x128xf32> to vector<32x128xf32>
    %59 = vector.shape_cast %56 : vector<32x128xf32> to vector<1x32x128xf32>
    tpu.vector_store %arg8[%c0_56, %c0_57, %c0_58], %59 {strides = array<i32>} : memref<1x32x128xf32, #tpu.memory_space<vmem>>, vector<1x32x128xf32>,
    return
  }
  func.func @transform_0(%arg0: i32) -> (i32, i32, i32) {
    %c0_i32 = arith.constant 0 : i32
    %c0_i32_0 = arith.constant 0 : i32
    %c0_i32_1 = arith.constant 0 : i32
    return %arg0, %c0_i32, %c0_i32_0 : i32, i32, i32
  }
  func.func @transform_1(%arg0: i32) -> (i32, i32) {
    %c0_i32 = arith.constant 0 : i32
    %c0_i32_0 = arith.constant 0 : i32
    %c0_i32_1 = arith.constant 0 : i32
    return %c0_i32, %c0_i32_0 : i32, i32
  }
  func.func @transform_2(%arg0: i32) -> (i32, i32) {
    %c0_i32 = arith.constant 0 : i32
    %c0_i32_0 = arith.constant 0 : i32
    %c0_i32_1 = arith.constant 0 : i32
    return %c0_i32, %c0_i32_0 : i32, i32
  }
  func.func @transform_3(%arg0: i32) -> (i32, i32) {
    %c0_i32 = arith.constant 0 : i32
    %c0_i32_0 = arith.constant 0 : i32
    %c0_i32_1 = arith.constant 0 : i32
    return %c0_i32, %c0_i32_0 : i32, i32
  }
  func.func @transform_4(%arg0: i32) -> (i32, i32, i32) {
    %c0_i32 = arith.constant 0 : i32
    %c0_i32_0 = arith.constant 0 : i32
    %c0_i32_1 = arith.constant 0 : i32
    %c0_i32_2 = arith.constant 0 : i32
    return %c0_i32, %c0_i32_0, %c0_i32_1 : i32, i32, i32
  }
  func.func @transform_5(%arg0: i32) -> (i32, i32) {
    %c0_i32 = arith.constant 0 : i32
    %c0_i32_0 = arith.constant 0 : i32
    %c0_i32_1 = arith.constant 0 : i32
    return %c0_i32, %c0_i32_0 : i32, i32
  }
  func.func @transform_6(%arg0: i32) -> (i32, i32) {
    %c0_i32 = arith.constant 0 : i32
    %c0_i32_0 = arith.constant 0 : i32
    %c0_i32_1 = arith.constant 0 : i32
    return %c0_i32, %c0_i32_0 : i32, i32
  }
  func.func @transform_7(%arg0: i32) -> (i32, i32, i32) {
    %c0_i32 = arith.constant 0 : i32
    %c0_i32_0 = arith.constant 0 : i32
    %c0_i32_1 = arith.constant 0 : i32
    return %arg0, %c0_i32, %c0_i32_0 : i32, i32, i32
  }
}

</mosaic_0001>

<llo_original>
// kernel: tile.16
$region0: #{tile.16}
  #allocation0 [shape = 's32[1]{0}', space=sflag, size = 0x4, scoped, tag = 'scoped memory for tile.16']
  %s0 = inlined_call_operand.vmem [shape: f32[16], index: 0, kind: input, shape index: {}]
  %s1 = inlined_call_operand.vmem [shape: f32[8,16], index: 1, kind: output, shape index: {}]
  // Predicated region
  $region2: #{tile.16} parent=0 // pred_check
    _
  $region3: #{tile.16} parent=0 // pred_check_branch
    %3 = sbr.rel (0) target = $region5
  $region4: #{tile.16} parent=0 // pred_region
    _
  $region5: #{tile.16} parent=0 // pred_fallthru
    _
  %v4 = vld [vmem:[%s0] ss:$0 sm:$0xff]
  %5 = vst [vmem:[%s1] sm:$0xff] %v4

// kernel: tile.17
$region0: #{tile.17}
  %s0 = inlined_call_operand.vmem [shape: f32[8,16], index: 0, kind: input, shape index: {}]
  %s1 = inlined_call_operand.vmem [shape: f32[1,128], index: 1, kind: output, shape index: {}]
  $region1: #{tile.17} parent=0
    #allocation0 [shape = 'u8[4096]{0}', space=vmem, size = 0x1000, scoped, tag = 'scoped mem for output reshape']
    %v2 = vld [vmem:[%s0] sm:$0x1]
    %vm3 = vcmask 130048
    %4 = vst.msk [vmem:[#allocation0] sm:$0x1] %vm3, %v2
    %s5 = scalar_lea.vmem %s0, 7
    %v6 = vld [vmem:[%s5] sm:$0x1]
    %7 = vrot.lane.b32.xlu0 %v6, 112
    %v8 = vpop.permute.xlu0 %7
    %vm9 = vcmask 1048448
    %10 = vst.msk [vmem:[#allocation0] sm:$0x1] %vm9, %v8
    %s11 = scalar_lea.vmem %s0, 6
    %v12 = vld [vmem:[%s11] sm:$0x1]
    %13 = vrot.lane.b32.xlu0 %v12, 96
    %v14 = vpop.permute.xlu0 %13
    %vm15 = vcmask 917248
    %16 = vst.msk [vmem:[#allocation0] sm:$0x1] %vm15, %v14
    %s17 = scalar_lea.vmem %s0, 5
    %v18 = vld [vmem:[%s17] sm:$0x1]
    %19 = vrot.lane.b32.xlu0 %v18, 80
    %v20 = vpop.permute.xlu0 %19
    %vm21 = vcmask 786048
    %22 = vst.msk [vmem:[#allocation0] sm:$0x1] %vm21, %v20
    %s23 = scalar_lea.vmem %s0, 4
    %v24 = vld [vmem:[%s23] sm:$0x1]
    %25 = vrot.lane.b32.xlu0 %v24, 64
    %v26 = vpop.permute.xlu0 %25
    %vm27 = vcmask 654848
    %28 = vst.msk [vmem:[#allocation0] sm:$0x1] %vm27, %v26
    %s29 = scalar_lea.vmem %s0, 3
    %v30 = vld [vmem:[%s29] sm:$0x1]
    %31 = vrot.lane.b32.xlu0 %v30, 48
    %v32 = vpop.permute.xlu0 %31
    %vm33 = vcmask 523648
    %34 = vst.msk [vmem:[#allocation0] sm:$0x1] %vm33, %v32
    %s35 = scalar_lea.vmem %s0, 2
    %v36 = vld [vmem:[%s35] sm:$0x1]
    %37 = vrot.lane.b32.xlu0 %v36, 32
    %v38 = vpop.permute.xlu0 %37
    %vm39 = vcmask 392448
    %40 = vst.msk [vmem:[#allocation0] sm:$0x1] %vm39, %v38
    %s41 = scalar_lea.vmem %s0, 1
    %v42 = vld [vmem:[%s41] sm:$0x1]
    %43 = vrot.lane.b32.xlu0 %v42, 16
    %v44 = vpop.permute.xlu0 %43
    %vm45 = vcmask 261248
    %46 = vst.msk [vmem:[#allocation0] sm:$0x1] %vm45, %v44
    %s48 = sshllo.u32 0, 1
    %v50 = vld [vmem:[#allocation0] sm:%s48]
    %s51 = sshllo.u32 0, 1
    %52 = vst [vmem:[%s1] sm:%s51] %v50

// kernel: tile.11
$region0: #{tile.11}
  #allocation0 [shape = 's32[1]{0}', space=sflag, size = 0x4, scoped, tag = 'scoped memory for tile.11']
  %s0 = inlined_call_operand.vmem [shape: f32[8], index: 0, kind: input, shape index: {}]
  %s1 = inlined_call_operand.vmem [shape: f32[8,8], index: 1, kind: output, shape index: {}]
  // Predicated region
  $region2: #{tile.11} parent=0 // pred_check
    _
  $region3: #{tile.11} parent=0 // pred_check_branch
    %3 = sbr.rel (0) target = $region5
  $region4: #{tile.11} parent=0 // pred_region
    _
  $region5: #{tile.11} parent=0 // pred_fallthru
    _
  %v4 = vld [vmem:[%s0] ss:$0 sm:$0xff]
  %5 = vst [vmem:[%s1] sm:$0xff] %v4

// kernel: tile.12
$region0: #{tile.12}
  %s0 = inlined_call_operand.vmem [shape: f32[8,8], index: 0, kind: input, shape index: {}]
  %s1 = inlined_call_operand.vmem [shape: f32[1,64], index: 1, kind: output, shape index: {}]
  $region1: #{tile.12} parent=0
    #allocation0 [shape = 'u8[4096]{0}', space=vmem, size = 0x1000, scoped, tag = 'scoped mem for output reshape']
    %v2 = vld [vmem:[%s0] sm:$0x1]
    %vm3 = vcmask 64512
    %4 = vst.msk [vmem:[#allocation0] sm:$0x1] %vm3, %v2
    %s5 = scalar_lea.vmem %s0, 7
    %v6 = vld [vmem:[%s5] sm:$0x1]
    %7 = vrot.lane.b32.xlu0 %v6, 56
    %v8 = vpop.permute.xlu0 %7
    %vm9 = vcmask 523712
    %10 = vst.msk [vmem:[#allocation0] sm:$0x1] %vm9, %v8
    %s11 = scalar_lea.vmem %s0, 6
    %v12 = vld [vmem:[%s11] sm:$0x1]
    %13 = vrot.lane.b32.xlu0 %v12, 48
    %v14 = vpop.permute.xlu0 %13
    %vm15 = vcmask 458112
    %16 = vst.msk [vmem:[#allocation0] sm:$0x1] %vm15, %v14
    %s17 = scalar_lea.vmem %s0, 5
    %v18 = vld [vmem:[%s17] sm:$0x1]
    %19 = vrot.lane.b32.xlu0 %v18, 40
    %v20 = vpop.permute.xlu0 %19
    %vm21 = vcmask 392512
    %22 = vst.msk [vmem:[#allocation0] sm:$0x1] %vm21, %v20
    %s23 = scalar_lea.vmem %s0, 4
    %v24 = vld [vmem:[%s23] sm:$0x1]
    %25 = vrot.lane.b32.xlu0 %v24, 32
    %v26 = vpop.permute.xlu0 %25
    %vm27 = vcmask 326912
    %28 = vst.msk [vmem:[#allocation0] sm:$0x1] %vm27, %v26
    %s29 = scalar_lea.vmem %s0, 3
    %v30 = vld [vmem:[%s29] sm:$0x1]
    %31 = vrot.lane.b32.xlu0 %v30, 24
    %v32 = vpop.permute.xlu0 %31
    %vm33 = vcmask 261312
    %34 = vst.msk [vmem:[#allocation0] sm:$0x1] %vm33, %v32
    %s35 = scalar_lea.vmem %s0, 2
    %v36 = vld [vmem:[%s35] sm:$0x1]
    %37 = vrot.lane.b32.xlu0 %v36, 16
    %v38 = vpop.permute.xlu0 %37
    %vm39 = vcmask 195712
    %40 = vst.msk [vmem:[#allocation0] sm:$0x1] %vm39, %v38
    %s41 = scalar_lea.vmem %s0, 1
    %v42 = vld [vmem:[%s41] sm:$0x1]
    %43 = vrot.lane.b32.xlu0 %v42, 8
    %v44 = vpop.permute.xlu0 %43
    %vm45 = vcmask 130112
    %46 = vst.msk [vmem:[#allocation0] sm:$0x1] %vm45, %v44
    %s48 = sshllo.u32 0, 1
    %v50 = vld [vmem:[#allocation0] sm:%s48]
    %s51 = sshllo.u32 0, 1
    %52 = vst [vmem:[%s1] sm:%s51] %v50

// kernel: a_call__.1
$region0: #{a_call__.1}
  #allocation0 [shape = 'u32[]', space=smem, size = 0x4, offset = 0x4, fixed_abs, tag = 'smem constant byte address 0x4 - core index']
  #allocation1 [shape = 'u32[144,128]{1,0:T(1,128)}', space=vmem, size = 0x12000, scoped, tag = 'internal scratch']
  #allocation2 [shape = 'f32[288,128]{1,0:T(8,128)}', space=vmem, size = 0x24000, scoped, tag = 'scratch operand']
  %s0 = inlined_call_operand.vmem [shape: bf16[2,32,128], index: 0, kind: input, shape index: {}]
  %s1 = inlined_call_operand.vmem [shape: bf16[128,64], index: 1, kind: input, shape index: {}]
  %s2 = inlined_call_operand.vmem [shape: f32[1,64], index: 2, kind: input, shape index: {}]
  %s3 = inlined_call_operand.vmem [shape: bf16[128,128], index: 3, kind: input, shape index: {}]
  %s4 = inlined_call_operand.vmem [shape: bf16[9,64,128], index: 4, kind: input, shape index: {}]
  %s5 = inlined_call_operand.vmem [shape: f32[32,288], index: 5, kind: input, shape index: {}]
  %s6 = inlined_call_operand.vmem [shape: f32[1,128], index: 6, kind: input, shape index: {}]
  %s7 = inlined_call_operand.vmem [shape: f32[2,32,128], index: 7, kind: output, shape index: {}]
  %s8 = sld [smem:[#allocation0]]
  $region61: #{a_call__.1} parent=0
    _
  %s10 = ssub.s32 1, %s8
  %s11 = scalar_select 0, %s10, %s8
  loop: start=0, step=1, limit=4
  $region2: #{a_call__.1} parent=0 // loop_pre_header
    _
  $region3: #{a_call__.1} parent=0 // loop_header
    %s13 = sphi 0, %s17
    %p14 = scmp.ge.s32.totalorder %s13, 4
    %s23 = sphi 0, %s25
    %s26 = sphi 0, %s23
    %s27 = sphi 0, %s26
    %s43 = sphi 0, %s27
    %s47 = sphi 0, %s47
    %s49 = sphi 0, %s47
    %s50 = sphi 0, %s49
    %s64 = sphi 0, %s50
    %s68 = sphi 0, %s68
    %s70 = sphi 0, %s68
    %s71 = sphi 0, %s70
    %s85 = sphi 0, %s71
    %s89 = sphi 0, %s89
    %s91 = sphi 0, %s89
    %s92 = sphi 0, %s91
    %s106 = sphi 0, %s92
    %s110 = sphi 0, %s110
    %s112 = sphi 0, %s110
    %s113 = sphi 0, %s112
    %s127 = sphi 0, %s113
    %s131 = sphi 0, %s131
    %s133 = sphi 0, %s131
    %s134 = sphi 0, %s133
    %s148 = sphi 0, %s134
    %s152 = sphi 0, %s152
    %s154 = sphi 0, %s152
    %s155 = sphi 0, %s154
    %s169 = sphi 0, %s155
    %s175 = sphi 0, %s177
    %s178 = sphi 0, %s175
    %s179 = sphi 0, %s178
    %s195 = sphi 0, %s179
  $region4: #{a_call__.1} parent=0 // loop_header_branch
    %16 = sbr.rel (%p14) target = $region8
  $region5: #{a_call__.1} parent=0 // loop_body
    %s18 = ssub.s32 %s13, 1
    %s19 = ssub.s32 %s13, 2
    %s20 = sadd.s32 %s13, 1
    %s21 = ssub.s32 %s13, %s20
    %p22 = scmp.eq.s32.totalorder %s21, 0
    %s24 = sadd.s32 %s23, 1
    %s25 = scalar_select %p22, %s23, %s24
    %p28 = pneg %p22
    %p29 = scmp.eq.s32.totalorder %s13, 1
    %p30 = por %p28, %p29
    %p31 = scmp.ne.s32.totalorder %s23, %s26
    %p32 = scmp.eq.s32.totalorder %s13, 0
    %p33 = por %p31, %p32
    %p34 = scmp.ne.s32.totalorder %s23, %s26
    %p35 = scmp.eq.s32.totalorder %s18, 1
    %p36 = por %p34, %p35
    %p37 = scmp.ne.s32.totalorder %s26, %s27
    %p38 = scmp.eq.s32.totalorder %s18, 0
    %p39 = por %p37, %p38
    %p40 = scmp.ne.s32.totalorder %s26, %s27
    %p41 = scmp.eq.s32.totalorder %s19, 1
    %p42 = por %p40, %p41
    %p44 = scmp.ne.s32.totalorder %s27, %s43
    %p45 = scmp.eq.s32.totalorder %s19, 0
    %p46 = por %p44, %p45
    %s48 = sadd.s32 %s47, 1
    %p51 = scmp.eq.s32.totalorder %s13, 1
    %p52 = scmp.ne.s32.totalorder %s47, %s49
    %p53 = scmp.eq.s32.totalorder %s13, 0
    %p54 = por %p52, %p53
    %p55 = scmp.ne.s32.totalorder %s47, %s49
    %p56 = scmp.eq.s32.totalorder %s18, 1
    %p57 = por %p55, %p56
    %p58 = scmp.ne.s32.totalorder %s49, %s50
    %p59 = scmp.eq.s32.totalorder %s18, 0
    %p60 = por %p58, %p59
    %p61 = scmp.ne.s32.totalorder %s49, %s50
    %p62 = scmp.eq.s32.totalorder %s19, 1
    %p63 = por %p61, %p62
    %p65 = scmp.ne.s32.totalorder %s50, %s64
    %p66 = scmp.eq.s32.totalorder %s19, 0
    %p67 = por %p65, %p66
    %s69 = sadd.s32 %s68, 1
    %p72 = scmp.eq.s32.totalorder %s13, 1
    %p73 = scmp.ne.s32.totalorder %s68, %s70
    %p74 = scmp.eq.s32.totalorder %s13, 0
    %p75 = por %p73, %p74
    %p76 = scmp.ne.s32.totalorder %s68, %s70
    %p77 = scmp.eq.s32.totalorder %s18, 1
    %p78 = por %p76, %p77
    %p79 = scmp.ne.s32.totalorder %s70, %s71
    %p80 = scmp.eq.s32.totalorder %s18, 0
    %p81 = por %p79, %p80
    %p82 = scmp.ne.s32.totalorder %s70, %s71
    %p83 = scmp.eq.s32.totalorder %s19, 1
    %p84 = por %p82, %p83
    %p86 = scmp.ne.s32.totalorder %s71, %s85
    %p87 = scmp.eq.s32.totalorder %s19, 0
    %p88 = por %p86, %p87
    %s90 = sadd.s32 %s89, 1
    %p93 = scmp.eq.s32.totalorder %s13, 1
    %p94 = scmp.ne.s32.totalorder %s89, %s91
    %p95 = scmp.eq.s32.totalorder %s13, 0
    %p96 = por %p94, %p95
    %p97 = scmp.ne.s32.totalorder %s89, %s91
    %p98 = scmp.eq.s32.totalorder %s18, 1
    %p99 = por %p97, %p98
    %p100 = scmp.ne.s32.totalorder %s91, %s92
    %p101 = scmp.eq.s32.totalorder %s18, 0
    %p102 = por %p100, %p101
    %p103 = scmp.ne.s32.totalorder %s91, %s92
    %p104 = scmp.eq.s32.totalorder %s19, 1
    %p105 = por %p103, %p104
    %p107 = scmp.ne.s32.totalorder %s92, %s106
    %p108 = scmp.eq.s32.totalorder %s19, 0
    %p109 = por %p107, %p108
    %s111 = sadd.s32 %s110, 1
    %p114 = scmp.eq.s32.totalorder %s13, 1
    %p115 = scmp.ne.s32.totalorder %s110, %s112
    %p116 = scmp.eq.s32.totalorder %s13, 0
    %p117 = por %p115, %p116
    %p118 = scmp.ne.s32.totalorder %s110, %s112
    %p119 = scmp.eq.s32.totalorder %s18, 1
    %p120 = por %p118, %p119
    %p121 = scmp.ne.s32.totalorder %s112, %s113
    %p122 = scmp.eq.s32.totalorder %s18, 0
    %p123 = por %p121, %p122
    %p124 = scmp.ne.s32.totalorder %s112, %s113
    %p125 = scmp.eq.s32.totalorder %s19, 1
    %p126 = por %p124, %p125
    %p128 = scmp.ne.s32.totalorder %s113, %s127
    %p129 = scmp.eq.s32.totalorder %s19, 0
    %p130 = por %p128, %p129
    %s132 = sadd.s32 %s131, 1
    %p135 = scmp.eq.s32.totalorder %s13, 1
    %p136 = scmp.ne.s32.totalorder %s131, %s133
    %p137 = scmp.eq.s32.totalorder %s13, 0
    %p138 = por %p136, %p137
    %p139 = scmp.ne.s32.totalorder %s131, %s133
    %p140 = scmp.eq.s32.totalorder %s18, 1
    %p141 = por %p139, %p140
    %p142 = scmp.ne.s32.totalorder %s133, %s134
    %p143 = scmp.eq.s32.totalorder %s18, 0
    %p144 = por %p142, %p143
    %p145 = scmp.ne.s32.totalorder %s133, %s134
    %p146 = scmp.eq.s32.totalorder %s19, 1
    %p147 = por %p145, %p146
    %p149 = scmp.ne.s32.totalorder %s134, %s148
    %p150 = scmp.eq.s32.totalorder %s19, 0
    %p151 = por %p149, %p150
    %s153 = sadd.s32 %s152, 1
    %p156 = scmp.eq.s32.totalorder %s13, 1
    %p157 = scmp.ne.s32.totalorder %s152, %s154
    %p158 = scmp.eq.s32.totalorder %s13, 0
    %p159 = por %p157, %p158
    %p160 = scmp.ne.s32.totalorder %s152, %s154
    %p161 = scmp.eq.s32.totalorder %s18, 1
    %p162 = por %p160, %p161
    %p163 = scmp.ne.s32.totalorder %s154, %s155
    %p164 = scmp.eq.s32.totalorder %s18, 0
    %p165 = por %p163, %p164
    %p166 = scmp.ne.s32.totalorder %s154, %s155
    %p167 = scmp.eq.s32.totalorder %s19, 1
    %p168 = por %p166, %p167
    %p170 = scmp.ne.s32.totalorder %s155, %s169
    %p171 = scmp.eq.s32.totalorder %s19, 0
    %p172 = por %p170, %p171
    %s173 = ssub.s32 %s13, %s20
    %p174 = scmp.eq.s32.totalorder %s173, 0
    %s176 = sadd.s32 %s175, 1
    %s177 = scalar_select %p174, %s175, %s176
    %p180 = pneg %p174
    %p181 = scmp.eq.s32.totalorder %s13, 1
    %p182 = por %p180, %p181
    %p183 = scmp.ne.s32.totalorder %s175, %s178
    %p184 = scmp.eq.s32.totalorder %s13, 0
    %p185 = por %p183, %p184
    %p186 = scmp.ne.s32.totalorder %s175, %s178
    %p187 = scmp.eq.s32.totalorder %s18, 1
    %p188 = por %p186, %p187
    %p189 = scmp.ne.s32.totalorder %s178, %s179
    %p190 = scmp.eq.s32.totalorder %s18, 0
    %p191 = por %p189, %p190
    %p192 = scmp.ne.s32.totalorder %s178, %s179
    %p193 = scmp.eq.s32.totalorder %s19, 1
    %p194 = por %p192, %p193
    %p196 = scmp.ne.s32.totalorder %s179, %s195
    %p197 = scmp.eq.s32.totalorder %s19, 0
    %p198 = por %p196, %p197
    %p199 = scmp.le.s32.totalorder 1, %s13
    %p200 = scmp.lt.s32.totalorder %s13, 3
    %p201 = pnand %p199, %p200
    %p202 = pneg %p201
    // Predicated region
    $region9: #{a_call__.1} parent=5 // pred_check
      _
    $region10: #{a_call__.1} parent=5 // pred_check_branch
      %204 = sbr.rel (%p201) target = $region12
    $region11: #{a_call__.1} parent=5 // pred_region
      %s205 = ssub.s32 %s13, 1
      // Predicated region
      $region13: #{a_call__.1} parent=11 // pred_check
        %p206 = pneg %p60
      $region14: #{a_call__.1} parent=11 // pred_check_branch
        %208 = sbr.rel (%p206) target = $region16
      $region15: #{a_call__.1} parent=11 // pred_region
        _
      $region16: #{a_call__.1} parent=11 // pred_fallthru
        _
      // Predicated region
      $region17: #{a_call__.1} parent=11 // pred_check
        %p209 = pneg %p81
      $region18: #{a_call__.1} parent=11 // pred_check_branch
        %211 = sbr.rel (%p209) target = $region20
      $region19: #{a_call__.1} parent=11 // pred_region
        _
      $region20: #{a_call__.1} parent=11 // pred_fallthru
        _
      // Predicated region
      $region21: #{a_call__.1} parent=11 // pred_check
        %p212 = pneg %p102
      $region22: #{a_call__.1} parent=11 // pred_check_branch
        %214 = sbr.rel (%p212) target = $region24
      $region23: #{a_call__.1} parent=11 // pred_region
        _
      $region24: #{a_call__.1} parent=11 // pred_fallthru
        _
      // Predicated region
      $region25: #{a_call__.1} parent=11 // pred_check
        %p215 = pneg %p123
      $region26: #{a_call__.1} parent=11 // pred_check_branch
        %217 = sbr.rel (%p215) target = $region28
      $region27: #{a_call__.1} parent=11 // pred_region
        _
      $region28: #{a_call__.1} parent=11 // pred_fallthru
        _
      // Predicated region
      $region29: #{a_call__.1} parent=11 // pred_check
        %p218 = pneg %p144
      $region30: #{a_call__.1} parent=11 // pred_check_branch
        %220 = sbr.rel (%p218) target = $region32
      $region31: #{a_call__.1} parent=11 // pred_region
        _
      $region32: #{a_call__.1} parent=11 // pred_fallthru
        _
      // Predicated region
      $region33: #{a_call__.1} parent=11 // pred_check
        %p221 = pneg %p165
      $region34: #{a_call__.1} parent=11 // pred_check_branch
        %223 = sbr.rel (%p221) target = $region36
      $region35: #{a_call__.1} parent=11 // pred_region
        _
      $region36: #{a_call__.1} parent=11 // pred_fallthru
        _
    $region12: #{a_call__.1} parent=5 // pred_fallthru
      _
    %p224 = scmp.lt.s32.totalorder %s13, 2
    // Predicated region
    $region37: #{a_call__.1} parent=5 // pred_check
      %p225 = pneg %p224
    $region38: #{a_call__.1} parent=5 // pred_check_branch
      %227 = sbr.rel (%p225) target = $region40
    $region39: #{a_call__.1} parent=5 // pred_region
      // Predicated region
      $region41: #{a_call__.1} parent=39 // pred_check
        %p228 = pneg %p33
      $region42: #{a_call__.1} parent=39 // pred_check_branch
        %230 = sbr.rel (%p228) target = $region44
      $region43: #{a_call__.1} parent=39 // pred_region
        %p231 = scmp.lt.s32.totalorder %s13, 1
        %s232 = scalar_select %p231, %s13, 1
        %s233 = smul.addr %s232, 4
        %s234 = smul.addr %s233, 4
        %s235 = scalar_lea.vmem %s0, %s234
      $region44: #{a_call__.1} parent=39 // pred_fallthru
        _
    $region40: #{a_call__.1} parent=5 // pred_fallthru
      _
    %p236 = scmp.le.s32.totalorder 1, %s13
    %p237 = scmp.lt.s32.totalorder %s13, 3
    %p238 = pnand %p236, %p237
    %p239 = pneg %p238
    // Predicated region
    $region45: #{a_call__.1} parent=5 // pred_check
      _
    $region46: #{a_call__.1} parent=5 // pred_check_branch
      %241 = sbr.rel (%p238) target = $region48
    $region47: #{a_call__.1} parent=5 // pred_region
      %s242 = ssub.s32 %s13, 1
      %p243 = scmp.lt.s32.totalorder %s18, 1
      %s244 = scalar_select %p243, %s18, 1
      %s245 = smul.addr %s244, 4
      %s246 = smul.addr %s245, 4
      %s247 = scalar_lea.vmem %s0, %s246
      %p248 = pneg %p39
      %p249 = pneg %p36
      %p250 = pneg %p60
      %p251 = pneg %p57
      %p252 = pneg %p81
      %p253 = pneg %p78
      %p254 = pneg %p102
      %p255 = pneg %p99
      %p256 = pneg %p123
      %p257 = pneg %p120
      %p258 = pneg %p144
      %p259 = pneg %p141
      %p260 = pneg %p165
      %p261 = pneg %p162
      %p262 = pneg %p191
      %p263 = pneg %p188
      %p264 = scmp.lt.s32.totalorder %s18, 1
      %s265 = scalar_select %p264, %s18, 1
      %s266 = smul.addr %s265, 4
      %s267 = smul.addr %s266, 8
      %s268 = scalar_lea.vmem %s7, %s267
      %p269 = scmp.lt.s32.totalorder %s18, 1
      %s270 = scalar_select %p269, %s18, 1
      %s271 = smul.addr %s270, 4
      %s272 = smul.addr %s271, 4
      %s273 = scalar_lea.vmem %s0, %s272
      %p274 = scmp.lt.s32.totalorder %s18, 1
      %s275 = scalar_select %p274, %s18, 1
      %s276 = smul.addr %s275, 4
      %s277 = smul.addr %s276, 8
      %s278 = scalar_lea.vmem %s7, %s277
      %v280 = vld [vmem:[%s273] sm:$0xf]
      %v281 = vld [vmem:[%s273 + $0x4] sm:$0xf]
      %v282 = vld [vmem:[%s273 + $0x8] sm:$0xf]
      %v283 = vld [vmem:[%s273 + $0xc] sm:$0xf]
      %v284 = vld [vmem:[%s1] sm:$0xf]
      %v285 = vld [vmem:[%s1 + $0x4] sm:$0xf]
      %v286 = vld [vmem:[%s1 + $0x8] sm:$0xf]
      %v287 = vld [vmem:[%s1 + $0xc] sm:$0xf]
      %v288 = vld [vmem:[%s1 + $0x10] sm:$0xf]
      %v289 = vld [vmem:[%s1 + $0x14] sm:$0xf]
      %v290 = vld [vmem:[%s1 + $0x18] sm:$0xf]
      %v291 = vld [vmem:[%s1 + $0x1c] sm:$0xf]
      %v292 = vld [vmem:[%s1 + $0x20] sm:$0xf]
      %v293 = vld [vmem:[%s1 + $0x24] sm:$0xf]
      %v294 = vld [vmem:[%s1 + $0x28] sm:$0xf]
      %v295 = vld [vmem:[%s1 + $0x2c] sm:$0xf]
      %v296 = vld [vmem:[%s1 + $0x30] sm:$0xf]
      %v297 = vld [vmem:[%s1 + $0x34] sm:$0xf]
      %v298 = vld [vmem:[%s1 + $0x38] sm:$0xf]
      %v299 = vld [vmem:[%s1 + $0x3c] sm:$0xf]
      %v300 = vld [vmem:[%s2] sm:$0x1]
      %v302 = vlaneseq
      %v303 = vshrl.u32 %v302, 7
      %v304 = vsub.s32 0, %v303
      %v305 = vrot.slane %v300, %v304
      %v311 = vunpack.c.l.b16 %v280
      %v312 = vunpack.c.l.b16 %v281
      %v313 = vunpack.c.l.b16 %v282
      %v314 = vunpack.c.l.b16 %v283
      %v315 = vpack.c.b16 %v312, %v311
      %v316 = vpack.c.b16 %v314, %v313
      %v335 = vunpack.c.l.b16 %v284
      %v336 = vunpack.c.l.b16 %v285
      %v337 = vunpack.c.l.b16 %v286
      %v338 = vunpack.c.l.b16 %v287
      %v339 = vunpack.c.l.b16 %v288
      %v340 = vunpack.c.l.b16 %v289
      %v341 = vunpack.c.l.b16 %v290
      %v342 = vunpack.c.l.b16 %v291
      %v343 = vunpack.c.l.b16 %v292
      %v344 = vunpack.c.l.b16 %v293
      %v345 = vunpack.c.l.b16 %v294
      %v346 = vunpack.c.l.b16 %v295
      %v347 = vunpack.c.l.b16 %v296
      %v348 = vunpack.c.l.b16 %v297
      %v349 = vunpack.c.l.b16 %v298
      %v350 = vunpack.c.l.b16 %v299
      %v351 = vpack.c.b16 %v336, %v335
      %v352 = vpack.c.b16 %v338, %v337
      %v353 = vpack.c.b16 %v340, %v339
      %v354 = vpack.c.b16 %v342, %v341
      %v355 = vpack.c.b16 %v344, %v343
      %v356 = vpack.c.b16 %v346, %v345
      %v357 = vpack.c.b16 %v348, %v347
      %v358 = vpack.c.b16 %v350, %v349
      %367 = vmatprep.subr.bf16.mxu0 0
      %368 = vmatpush1.bf16.msra.mxu0 %v351
      %369 = vmatprep.subr.bf16.mxu0 0
      %370 = vmatpush1.bf16.msra.mxu0 %v352
      %371 = vmatprep.subr.bf16.mxu0 0
      %372 = vmatpush1.bf16.msra.mxu0 %v353
      %373 = vmatprep.subr.bf16.mxu0 0
      %374 = vmatpush1.bf16.msra.mxu0 %v354
      %375 = vmatprep.subr.bf16.mxu0 0
      %376 = vmatpush1.bf16.msra.mxu0 %v355
      %377 = vmatprep.subr.bf16.mxu0 0
      %378 = vmatpush1.bf16.msra.mxu0 %v356
      %379 = vmatprep.subr.bf16.mxu0 0
      %380 = vmatpush1.bf16.msra.mxu0 %v357
      %381 = vmatprep.subr.bf16.mxu0 0
      %382 = vmatpush1.bf16.msra.mxu0 %v358
      %383 = vmatprep.subr.bf16.mxu0 0
      %384 = vmatpush1.bf16.msra.mxu0 0
      %385 = vmatprep.subr.bf16.mxu0 0
      %386 = vmatpush1.bf16.msra.mxu0 0
      %387 = vmatprep.subr.bf16.mxu0 0
      %388 = vmatpush1.bf16.msra.mxu0 0
      %389 = vmatprep.subr.bf16.mxu0 0
      %390 = vmatpush1.bf16.msra.mxu0 0
      %391 = vmatprep.subr.bf16.mxu0 0
      %392 = vmatpush1.bf16.msra.mxu0 0
      %393 = vmatprep.subr.bf16.mxu0 0
      %394 = vmatpush1.bf16.msra.mxu0 0
      %395 = vmatprep.subr.bf16.mxu0 0
      %396 = vmatpush1.bf16.msra.mxu0 0
      %397 = vmatprep.subr.bf16.mxu0 0
      %398 = vmatpush1.bf16.msra.mxu0 0
      %399 = vmatprep.mubr.bf16.mxu0 0
      %400 = vmatmul.mubr.bf16.gmra.mrb[0].mxu0 %v315
      %v401 = vpop.f32.mrb[0].mxu0
      %v402 = vadd.f32 %v305, %v401
      %v403 = vpop.f32.mrb[0].mxu0
      %v404 = vpop.f32.mrb[0].mxu0
      %v405 = vadd.f32 %v305, %v404
      %v406 = vpop.f32.mrb[0].mxu0
      %407 = vmatprep.mubr.bf16.mxu0 0
      %408 = vmatmul.mubr.bf16.gmra.mrb[0].mxu0 %v316
      %v409 = vpop.f32.mrb[0].mxu0
      %v410 = vadd.f32 %v305, %v409
      %v411 = vpop.f32.mrb[0].mxu0
      %v412 = vpop.f32.mrb[0].mxu0
      %v413 = vadd.f32 %v305, %v412
      %v414 = vpop.f32.mrb[0].mxu0
      %415 = vdwg.mxu0
      %v416 = vmax.f32 %v402, 0.0
      %v417 = vmax.f32 %v405, 0.0
      %v418 = vmax.f32 %v410, 0.0
      %v419 = vmax.f32 %v413, 0.0
      %v420 = vpack.c.bf16 %v417, %v416
      %v421 = vpack.c.bf16 %v419, %v418
      %v422 = vld [vmem:[%s4] sm:$0xf]
      %v423 = vld [vmem:[%s4 + $0x4] sm:$0xf]
      %v424 = vld [vmem:[%s4 + $0x8] sm:$0xf]
      %v425 = vld [vmem:[%s4 + $0xc] sm:$0xf]
      %v426 = vld [vmem:[%s4 + $0x10] sm:$0xf]
      %v427 = vld [vmem:[%s4 + $0x14] sm:$0xf]
      %v428 = vld [vmem:[%s4 + $0x18] sm:$0xf]
      %v429 = vld [vmem:[%s4 + $0x1c] sm:$0xf]
      %v438 = vunpack.c.l.b16 %v422
      %v439 = vunpack.c.l.b16 %v423
      %v440 = vunpack.c.l.b16 %v424
      %v441 = vunpack.c.l.b16 %v425
      %v442 = vunpack.c.l.b16 %v426
      %v443 = vunpack.c.l.b16 %v427
      %v444 = vunpack.c.l.b16 %v428
      %v445 = vunpack.c.l.b16 %v429
      %v446 = vpack.c.b16 %v439, %v438
      %v447 = vpack.c.b16 %v441, %v440
      %v448 = vpack.c.b16 %v443, %v442
      %v449 = vpack.c.b16 %v445, %v444
      %vm454 = vcmask 523264
      %v456 = vsel %vm454, %v420, 0
      %v459 = vsel %vm454, %v421, 0
      %461 = vmatprep.subr.bf16.mxu0 0
      %462 = vmatpush1.bf16.msra.mxu0 %v446
      %463 = vmatprep.subr.bf16.mxu0 0
      %464 = vmatpush1.bf16.msra.mxu0 %v447
      %465 = vmatprep.subr.bf16.mxu0 0
      %466 = vmatpush1.bf16.msra.mxu0 %v448
      %467 = vmatprep.subr.bf16.mxu0 0
      %468 = vmatpush1.bf16.msra.mxu0 %v449
      %469 = vmatprep.subr.bf16.mxu0 0
      %470 = vmatpush1.bf16.msra.mxu0 0
      %471 = vmatprep.subr.bf16.mxu0 0
      %472 = vmatpush1.bf16.msra.mxu0 0
      %473 = vmatprep.subr.bf16.mxu0 0
      %474 = vmatpush1.bf16.msra.mxu0 0
      %475 = vmatprep.subr.bf16.mxu0 0
      %476 = vmatpush1.bf16.msra.mxu0 0
      %477 = vmatprep.subr.bf16.mxu0 0
      %478 = vmatpush1.bf16.msra.mxu0 0
      %479 = vmatprep.subr.bf16.mxu0 0
      %480 = vmatpush1.bf16.msra.mxu0 0
      %481 = vmatprep.subr.bf16.mxu0 0
      %482 = vmatpush1.bf16.msra.mxu0 0
      %483 = vmatprep.subr.bf16.mxu0 0
      %484 = vmatpush1.bf16.msra.mxu0 0
      %485 = vmatprep.subr.bf16.mxu0 0
      %486 = vmatpush1.bf16.msra.mxu0 0
      %487 = vmatprep.subr.bf16.mxu0 0
      %488 = vmatpush1.bf16.msra.mxu0 0
      %489 = vmatprep.subr.bf16.mxu0 0
      %490 = vmatpush1.bf16.msra.mxu0 0
      %491 = vmatprep.subr.bf16.mxu0 0
      %492 = vmatpush1.bf16.msra.mxu0 0
      %493 = vmatprep.mubr.bf16.mxu0 0
      %494 = vmatmul.mubr.bf16.gmra.mrb[0].mxu0 %v456
      %v495 = vpop.f32.mrb[0].mxu0
      %v496 = vadd.f32 0.0, %v495
      %v497 = vpop.f32.mrb[0].mxu0
      %v498 = vpop.f32.mrb[0].mxu0
      %v499 = vadd.f32 0.0, %v498
      %v500 = vpop.f32.mrb[0].mxu0
      %501 = vmatprep.mubr.bf16.mxu0 0
      %502 = vmatmul.mubr.bf16.gmra.mrb[0].mxu0 %v459
      %v503 = vpop.f32.mrb[0].mxu0
      %v504 = vadd.f32 0.0, %v503
      %v505 = vpop.f32.mrb[0].mxu0
      %v506 = vpop.f32.mrb[0].mxu0
      %v507 = vadd.f32 0.0, %v506
      %v508 = vpop.f32.mrb[0].mxu0
      %509 = vdwg.mxu0
      %510 = vst [vmem:[#allocation2] sm:$0xff] %v496
      %511 = vst [vmem:[#allocation2 + $0x8] sm:$0xff] %v499
      %512 = vst [vmem:[#allocation2 + $0x10] sm:$0xff] %v504
      %513 = vst [vmem:[#allocation2 + $0x18] sm:$0xff] %v507
      %s514 = scalar_lea.vmem %s4, 32
      %v515 = vld [vmem:[%s514] sm:$0xf]
      %v516 = vld [vmem:[%s514 + $0x4] sm:$0xf]
      %v517 = vld [vmem:[%s514 + $0x8] sm:$0xf]
      %v518 = vld [vmem:[%s514 + $0xc] sm:$0xf]
      %v519 = vld [vmem:[%s514 + $0x10] sm:$0xf]
      %v520 = vld [vmem:[%s514 + $0x14] sm:$0xf]
      %v521 = vld [vmem:[%s514 + $0x18] sm:$0xf]
      %v522 = vld [vmem:[%s514 + $0x1c] sm:$0xf]
      %v531 = vunpack.c.l.b16 %v515
      %v532 = vunpack.c.l.b16 %v516
      %v533 = vunpack.c.l.b16 %v517
      %v534 = vunpack.c.l.b16 %v518
      %v535 = vunpack.c.l.b16 %v519
      %v536 = vunpack.c.l.b16 %v520
      %v537 = vunpack.c.l.b16 %v521
      %v538 = vunpack.c.l.b16 %v522
      %v539 = vpack.c.b16 %v532, %v531
      %v540 = vpack.c.b16 %v534, %v533
      %v541 = vpack.c.b16 %v536, %v535
      %v542 = vpack.c.b16 %v538, %v537
      %547 = vmatprep.subr.bf16.mxu0 0
      %548 = vmatpush1.bf16.msra.mxu0 %v539
      %549 = vmatprep.subr.bf16.mxu0 0
      %550 = vmatpush1.bf16.msra.mxu0 %v540
      %551 = vmatprep.subr.bf16.mxu0 0
      %552 = vmatpush1.bf16.msra.mxu0 %v541
      %553 = vmatprep.subr.bf16.mxu0 0
      %554 = vmatpush1.bf16.msra.mxu0 %v542
      %555 = vmatprep.subr.bf16.mxu0 0
      %556 = vmatpush1.bf16.msra.mxu0 0
      %557 = vmatprep.subr.bf16.mxu0 0
      %558 = vmatpush1.bf16.msra.mxu0 0
      %559 = vmatprep.subr.bf16.mxu0 0
      %560 = vmatpush1.bf16.msra.mxu0 0
      %561 = vmatprep.subr.bf16.mxu0 0
      %562 = vmatpush1.bf16.msra.mxu0 0
      %563 = vmatprep.subr.bf16.mxu0 0
      %564 = vmatpush1.bf16.msra.mxu0 0
      %565 = vmatprep.subr.bf16.mxu0 0
      %566 = vmatpush1.bf16.msra.mxu0 0
      %567 = vmatprep.subr.bf16.mxu0 0
      %568 = vmatpush1.bf16.msra.mxu0 0
      %569 = vmatprep.subr.bf16.mxu0 0
      %570 = vmatpush1.bf16.msra.mxu0 0
      %571 = vmatprep.subr.bf16.mxu0 0
      %572 = vmatpush1.bf16.msra.mxu0 0
      %573 = vmatprep.subr.bf16.mxu0 0
      %574 = vmatpush1.bf16.msra.mxu0 0
      %575 = vmatprep.subr.bf16.mxu0 0
      %576 = vmatpush1.bf16.msra.mxu0 0
      %577 = vmatprep.subr.bf16.mxu0 0
      %578 = vmatpush1.bf16.msra.mxu0 0
      %579 = vmatprep.mubr.bf16.mxu0 0
      %580 = vmatmul.mubr.bf16.gmra.mrb[0].mxu0 %v456
      %v581 = vpop.f32.mrb[0].mxu0
      %v582 = vadd.f32 0.0, %v581
      %v583 = vpop.f32.mrb[0].mxu0
      %v584 = vpop.f32.mrb[0].mxu0
      %v585 = vadd.f32 0.0, %v584
      %v586 = vpop.f32.mrb[0].mxu0
      %587 = vmatprep.mubr.bf16.mxu0 0
      %588 = vmatmul.mubr.bf16.gmra.mrb[0].mxu0 %v459
      %v589 = vpop.f32.mrb[0].mxu0
      %v590 = vadd.f32 0.0, %v589
      %v591 = vpop.f32.mrb[0].mxu0
      %v592 = vpop.f32.mrb[0].mxu0
      %v593 = vadd.f32 0.0, %v592
      %v594 = vpop.f32.mrb[0].mxu0
      %595 = vdwg.mxu0
      %596 = vst [vmem:[#allocation2 + $0x20] sm:$0xff] %v582
      %597 = vst [vmem:[#allocation2 + $0x28] sm:$0xff] %v585
      %598 = vst [vmem:[#allocation2 + $0x30] sm:$0xff] %v590
      %599 = vst [vmem:[#allocation2 + $0x38] sm:$0xff] %v593
      %s600 = scalar_lea.vmem %s4, 64
      %v601 = vld [vmem:[%s600] sm:$0xf]
      %v602 = vld [vmem:[%s600 + $0x4] sm:$0xf]
      %v603 = vld [vmem:[%s600 + $0x8] sm:$0xf]
      %v604 = vld [vmem:[%s600 + $0xc] sm:$0xf]
      %v605 = vld [vmem:[%s600 + $0x10] sm:$0xf]
      %v606 = vld [vmem:[%s600 + $0x14] sm:$0xf]
      %v607 = vld [vmem:[%s600 + $0x18] sm:$0xf]
      %v608 = vld [vmem:[%s600 + $0x1c] sm:$0xf]
      %v617 = vunpack.c.l.b16 %v601
      %v618 = vunpack.c.l.b16 %v602
      %v619 = vunpack.c.l.b16 %v603
      %v620 = vunpack.c.l.b16 %v604
      %v621 = vunpack.c.l.b16 %v605
      %v622 = vunpack.c.l.b16 %v606
      %v623 = vunpack.c.l.b16 %v607
      %v624 = vunpack.c.l.b16 %v608
      %v625 = vpack.c.b16 %v618, %v617
      %v626 = vpack.c.b16 %v620, %v619
      %v627 = vpack.c.b16 %v622, %v621
      %v628 = vpack.c.b16 %v624, %v623
      %633 = vmatprep.subr.bf16.mxu0 0
      %634 = vmatpush1.bf16.msra.mxu0 %v625
      %635 = vmatprep.subr.bf16.mxu0 0
      %636 = vmatpush1.bf16.msra.mxu0 %v626
      %637 = vmatprep.subr.bf16.mxu0 0
      %638 = vmatpush1.bf16.msra.mxu0 %v627
      %639 = vmatprep.subr.bf16.mxu0 0
      %640 = vmatpush1.bf16.msra.mxu0 %v628
      %641 = vmatprep.subr.bf16.mxu0 0
      %642 = vmatpush1.bf16.msra.mxu0 0
      %643 = vmatprep.subr.bf16.mxu0 0
      %644 = vmatpush1.bf16.msra.mxu0 0
      %645 = vmatprep.subr.bf16.mxu0 0
      %646 = vmatpush1.bf16.msra.mxu0 0
      %647 = vmatprep.subr.bf16.mxu0 0
      %648 = vmatpush1.bf16.msra.mxu0 0
      %649 = vmatprep.subr.bf16.mxu0 0
      %650 = vmatpush1.bf16.msra.mxu0 0
      %651 = vmatprep.subr.bf16.mxu0 0
      %652 = vmatpush1.bf16.msra.mxu0 0
      %653 = vmatprep.subr.bf16.mxu0 0
      %654 = vmatpush1.bf16.msra.mxu0 0
      %655 = vmatprep.subr.bf16.mxu0 0
      %656 = vmatpush1.bf16.msra.mxu0 0
      %657 = vmatprep.subr.bf16.mxu0 0
      %658 = vmatpush1.bf16.msra.mxu0 0
      %659 = vmatprep.subr.bf16.mxu0 0
      %660 = vmatpush1.bf16.msra.mxu0 0
      %661 = vmatprep.subr.bf16.mxu0 0
      %662 = vmatpush1.bf16.msra.mxu0 0
      %663 = vmatprep.subr.bf16.mxu0 0
      %664 = vmatpush1.bf16.msra.mxu0 0
      %665 = vmatprep.mubr.bf16.mxu0 0
      %666 = vmatmul.mubr.bf16.gmra.mrb[0].mxu0 %v456
      %v667 = vpop.f32.mrb[0].mxu0
      %v668 = vadd.f32 0.0, %v667
      %v669 = vpop.f32.mrb[0].mxu0
      %v670 = vpop.f32.mrb[0].mxu0
      %v671 = vadd.f32 0.0, %v670
      %v672 = vpop.f32.mrb[0].mxu0
      %673 = vmatprep.mubr.bf16.mxu0 0
      %674 = vmatmul.mubr.bf16.gmra.mrb[0].mxu0 %v459
      %v675 = vpop.f32.mrb[0].mxu0
      %v676 = vadd.f32 0.0, %v675
      %v677 = vpop.f32.mrb[0].mxu0
      %v678 = vpop.f32.mrb[0].mxu0
      %v679 = vadd.f32 0.0, %v678
      %v680 = vpop.f32.mrb[0].mxu0
      %681 = vdwg.mxu0
      %682 = vst [vmem:[#allocation2 + $0x40] sm:$0xff] %v668
      %683 = vst [vmem:[#allocation2 + $0x48] sm:$0xff] %v671
      %684 = vst [vmem:[#allocation2 + $0x50] sm:$0xff] %v676
      %685 = vst [vmem:[#allocation2 + $0x58] sm:$0xff] %v679
      %s686 = scalar_lea.vmem %s4, 96
      %v687 = vld [vmem:[%s686] sm:$0xf]
      %v688 = vld [vmem:[%s686 + $0x4] sm:$0xf]
      %v689 = vld [vmem:[%s686 + $0x8] sm:$0xf]
      %v690 = vld [vmem:[%s686 + $0xc] sm:$0xf]
      %v691 = vld [vmem:[%s686 + $0x10] sm:$0xf]
      %v692 = vld [vmem:[%s686 + $0x14] sm:$0xf]
      %v693 = vld [vmem:[%s686 + $0x18] sm:$0xf]
      %v694 = vld [vmem:[%s686 + $0x1c] sm:$0xf]
      %v703 = vunpack.c.l.b16 %v687
      %v704 = vunpack.c.l.b16 %v688
      %v705 = vunpack.c.l.b16 %v689
      %v706 = vunpack.c.l.b16 %v690
      %v707 = vunpack.c.l.b16 %v691
      %v708 = vunpack.c.l.b16 %v692
      %v709 = vunpack.c.l.b16 %v693
      %v710 = vunpack.c.l.b16 %v694
      %v711 = vpack.c.b16 %v704, %v703
      %v712 = vpack.c.b16 %v706, %v705
      %v713 = vpack.c.b16 %v708, %v707
      %v714 = vpack.c.b16 %v710, %v709
      %719 = vmatprep.subr.bf16.mxu0 0
      %720 = vmatpush1.bf16.msra.mxu0 %v711
      %721 = vmatprep.subr.bf16.mxu0 0
      %722 = vmatpush1.bf16.msra.mxu0 %v712
      %723 = vmatprep.subr.bf16.mxu0 0
      %724 = vmatpush1.bf16.msra.mxu0 %v713
      %725 = vmatprep.subr.bf16.mxu0 0
      %726 = vmatpush1.bf16.msra.mxu0 %v714
      %727 = vmatprep.subr.bf16.mxu0 0
      %728 = vmatpush1.bf16.msra.mxu0 0
      %729 = vmatprep.subr.bf16.mxu0 0
      %730 = vmatpush1.bf16.msra.mxu0 0
      %731 = vmatprep.subr.bf16.mxu0 0
      %732 = vmatpush1.bf16.msra.mxu0 0
      %733 = vmatprep.subr.bf16.mxu0 0
      %734 = vmatpush1.bf16.msra.mxu0 0
      %735 = vmatprep.subr.bf16.mxu0 0
      %736 = vmatpush1.bf16.msra.mxu0 0
      %737 = vmatprep.subr.bf16.mxu0 0
      %738 = vmatpush1.bf16.msra.mxu0 0
      %739 = vmatprep.subr.bf16.mxu0 0
      %740 = vmatpush1.bf16.msra.mxu0 0
      %741 = vmatprep.subr.bf16.mxu0 0
      %742 = vmatpush1.bf16.msra.mxu0 0
      %743 = vmatprep.subr.bf16.mxu0 0
      %744 = vmatpush1.bf16.msra.mxu0 0
      %745 = vmatprep.subr.bf16.mxu0 0
      %746 = vmatpush1.bf16.msra.mxu0 0
      %747 = vmatprep.subr.bf16.mxu0 0
      %748 = vmatpush1.bf16.msra.mxu0 0
      %749 = vmatprep.subr.bf16.mxu0 0
      %750 = vmatpush1.bf16.msra.mxu0 0
      %751 = vmatprep.mubr.bf16.mxu0 0
      %752 = vmatmul.mubr.bf16.gmra.mrb[0].mxu0 %v456
      %v753 = vpop.f32.mrb[0].mxu0
      %v754 = vadd.f32 0.0, %v753
      %v755 = vpop.f32.mrb[0].mxu0
      %v756 = vpop.f32.mrb[0].mxu0
      %v757 = vadd.f32 0.0, %v756
      %v758 = vpop.f32.mrb[0].mxu0
      %759 = vmatprep.mubr.bf16.mxu0 0
      %760 = vmatmul.mubr.bf16.gmra.mrb[0].mxu0 %v459
      %v761 = vpop.f32.mrb[0].mxu0
      %v762 = vadd.f32 0.0, %v761
      %v763 = vpop.f32.mrb[0].mxu0
      %v764 = vpop.f32.mrb[0].mxu0
      %v765 = vadd.f32 0.0, %v764
      %v766 = vpop.f32.mrb[0].mxu0
      %767 = vdwg.mxu0
      %768 = vst [vmem:[#allocation2 + $0x60] sm:$0xff] %v754
      %769 = vst [vmem:[#allocation2 + $0x68] sm:$0xff] %v757
      %770 = vst [vmem:[#allocation2 + $0x70] sm:$0xff] %v762
      %771 = vst [vmem:[#allocation2 + $0x78] sm:$0xff] %v765
      %s772 = scalar_lea.vmem %s4, 128
      %v773 = vld [vmem:[%s772] sm:$0xf]
      %v774 = vld [vmem:[%s772 + $0x4] sm:$0xf]
      %v775 = vld [vmem:[%s772 + $0x8] sm:$0xf]
      %v776 = vld [vmem:[%s772 + $0xc] sm:$0xf]
      %v777 = vld [vmem:[%s772 + $0x10] sm:$0xf]
      %v778 = vld [vmem:[%s772 + $0x14] sm:$0xf]
      %v779 = vld [vmem:[%s772 + $0x18] sm:$0xf]
      %v780 = vld [vmem:[%s772 + $0x1c] sm:$0xf]
      %v789 = vunpack.c.l.b16 %v773
      %v790 = vunpack.c.l.b16 %v774
      %v791 = vunpack.c.l.b16 %v775
      %v792 = vunpack.c.l.b16 %v776
      %v793 = vunpack.c.l.b16 %v777
      %v794 = vunpack.c.l.b16 %v778
      %v795 = vunpack.c.l.b16 %v779
      %v796 = vunpack.c.l.b16 %v780
      %v797 = vpack.c.b16 %v790, %v789
      %v798 = vpack.c.b16 %v792, %v791
      %v799 = vpack.c.b16 %v794, %v793
      %v800 = vpack.c.b16 %v796, %v795
      %805 = vmatprep.subr.bf16.mxu0 0
      %806 = vmatpush1.bf16.msra.mxu0 %v797
      %807 = vmatprep.subr.bf16.mxu0 0
      %808 = vmatpush1.bf16.msra.mxu0 %v798
      %809 = vmatprep.subr.bf16.mxu0 0
      %810 = vmatpush1.bf16.msra.mxu0 %v799
      %811 = vmatprep.subr.bf16.mxu0 0
      %812 = vmatpush1.bf16.msra.mxu0 %v800
      %813 = vmatprep.subr.bf16.mxu0 0
      %814 = vmatpush1.bf16.msra.mxu0 0
      %815 = vmatprep.subr.bf16.mxu0 0
      %816 = vmatpush1.bf16.msra.mxu0 0
      %817 = vmatprep.subr.bf16.mxu0 0
      %818 = vmatpush1.bf16.msra.mxu0 0
      %819 = vmatprep.subr.bf16.mxu0 0
      %820 = vmatpush1.bf16.msra.mxu0 0
      %821 = vmatprep.subr.bf16.mxu0 0
      %822 = vmatpush1.bf16.msra.mxu0 0
      %823 = vmatprep.subr.bf16.mxu0 0
      %824 = vmatpush1.bf16.msra.mxu0 0
      %825 = vmatprep.subr.bf16.mxu0 0
      %826 = vmatpush1.bf16.msra.mxu0 0
      %827 = vmatprep.subr.bf16.mxu0 0
      %828 = vmatpush1.bf16.msra.mxu0 0
      %829 = vmatprep.subr.bf16.mxu0 0
      %830 = vmatpush1.bf16.msra.mxu0 0
      %831 = vmatprep.subr.bf16.mxu0 0
      %832 = vmatpush1.bf16.msra.mxu0 0
      %833 = vmatprep.subr.bf16.mxu0 0
      %834 = vmatpush1.bf16.msra.mxu0 0
      %835 = vmatprep.subr.bf16.mxu0 0
      %836 = vmatpush1.bf16.msra.mxu0 0
      %837 = vmatprep.mubr.bf16.mxu0 0
      %838 = vmatmul.mubr.bf16.gmra.mrb[0].mxu0 %v456
      %v839 = vpop.f32.mrb[0].mxu0
      %v840 = vadd.f32 0.0, %v839
      %v841 = vpop.f32.mrb[0].mxu0
      %v842 = vpop.f32.mrb[0].mxu0
      %v843 = vadd.f32 0.0, %v842
      %v844 = vpop.f32.mrb[0].mxu0
      %845 = vmatprep.mubr.bf16.mxu0 0
      %846 = vmatmul.mubr.bf16.gmra.mrb[0].mxu0 %v459
      %v847 = vpop.f32.mrb[0].mxu0
      %v848 = vadd.f32 0.0, %v847
      %v849 = vpop.f32.mrb[0].mxu0
      %v850 = vpop.f32.mrb[0].mxu0
      %v851 = vadd.f32 0.0, %v850
      %v852 = vpop.f32.mrb[0].mxu0
      %853 = vdwg.mxu0
      %854 = vst [vmem:[#allocation2 + $0x80] sm:$0xff] %v840
      %855 = vst [vmem:[#allocation2 + $0x88] sm:$0xff] %v843
      %856 = vst [vmem:[#allocation2 + $0x90] sm:$0xff] %v848
      %857 = vst [vmem:[#allocation2 + $0x98] sm:$0xff] %v851
      %s858 = scalar_lea.vmem %s4, 160
      %v859 = vld [vmem:[%s858] sm:$0xf]
      %v860 = vld [vmem:[%s858 + $0x4] sm:$0xf]
      %v861 = vld [vmem:[%s858 + $0x8] sm:$0xf]
      %v862 = vld [vmem:[%s858 + $0xc] sm:$0xf]
      %v863 = vld [vmem:[%s858 + $0x10] sm:$0xf]
      %v864 = vld [vmem:[%s858 + $0x14] sm:$0xf]
      %v865 = vld [vmem:[%s858 + $0x18] sm:$0xf]
      %v866 = vld [vmem:[%s858 + $0x1c] sm:$0xf]
      %v875 = vunpack.c.l.b16 %v859
      %v876 = vunpack.c.l.b16 %v860
      %v877 = vunpack.c.l.b16 %v861
      %v878 = vunpack.c.l.b16 %v862
      %v879 = vunpack.c.l.b16 %v863
      %v880 = vunpack.c.l.b16 %v864
      %v881 = vunpack.c.l.b16 %v865
      %v882 = vunpack.c.l.b16 %v866
      %v883 = vpack.c.b16 %v876, %v875
      %v884 = vpack.c.b16 %v878, %v877
      %v885 = vpack.c.b16 %v880, %v879
      %v886 = vpack.c.b16 %v882, %v881
      %891 = vmatprep.subr.bf16.mxu0 0
      %892 = vmatpush1.bf16.msra.mxu0 %v883
      %893 = vmatprep.subr.bf16.mxu0 0
      %894 = vmatpush1.bf16.msra.mxu0 %v884
      %895 = vmatprep.subr.bf16.mxu0 0
      %896 = vmatpush1.bf16.msra.mxu0 %v885
      %897 = vmatprep.subr.bf16.mxu0 0
      %898 = vmatpush1.bf16.msra.mxu0 %v886
      %899 = vmatprep.subr.bf16.mxu0 0
      %900 = vmatpush1.bf16.msra.mxu0 0
      %901 = vmatprep.subr.bf16.mxu0 0
      %902 = vmatpush1.bf16.msra.mxu0 0
      %903 = vmatprep.subr.bf16.mxu0 0
      %904 = vmatpush1.bf16.msra.mxu0 0
      %905 = vmatprep.subr.bf16.mxu0 0
      %906 = vmatpush1.bf16.msra.mxu0 0
      %907 = vmatprep.subr.bf16.mxu0 0
      %908 = vmatpush1.bf16.msra.mxu0 0
      %909 = vmatprep.subr.bf16.mxu0 0
      %910 = vmatpush1.bf16.msra.mxu0 0
      %911 = vmatprep.subr.bf16.mxu0 0
      %912 = vmatpush1.bf16.msra.mxu0 0
      %913 = vmatprep.subr.bf16.mxu0 0
      %914 = vmatpush1.bf16.msra.mxu0 0
      %915 = vmatprep.subr.bf16.mxu0 0
      %916 = vmatpush1.bf16.msra.mxu0 0
      %917 = vmatprep.subr.bf16.mxu0 0
      %918 = vmatpush1.bf16.msra.mxu0 0
      %919 = vmatprep.subr.bf16.mxu0 0
      %920 = vmatpush1.bf16.msra.mxu0 0
      %921 = vmatprep.subr.bf16.mxu0 0
      %922 = vmatpush1.bf16.msra.mxu0 0
      %923 = vmatprep.mubr.bf16.mxu0 0
      %924 = vmatmul.mubr.bf16.gmra.mrb[0].mxu0 %v456
      %v925 = vpop.f32.mrb[0].mxu0
      %v926 = vadd.f32 0.0, %v925
      %v927 = vpop.f32.mrb[0].mxu0
      %v928 = vpop.f32.mrb[0].mxu0
      %v929 = vadd.f32 0.0, %v928
      %v930 = vpop.f32.mrb[0].mxu0
      %931 = vmatprep.mubr.bf16.mxu0 0
      %932 = vmatmul.mubr.bf16.gmra.mrb[0].mxu0 %v459
      %v933 = vpop.f32.mrb[0].mxu0
      %v934 = vadd.f32 0.0, %v933
      %v935 = vpop.f32.mrb[0].mxu0
      %v936 = vpop.f32.mrb[0].mxu0
      %v937 = vadd.f32 0.0, %v936
      %v938 = vpop.f32.mrb[0].mxu0
      %939 = vdwg.mxu0
      %940 = vst [vmem:[#allocation2 + $0xa0] sm:$0xff] %v926
      %941 = vst [vmem:[#allocation2 + $0xa8] sm:$0xff] %v929
      %942 = vst [vmem:[#allocation2 + $0xb0] sm:$0xff] %v934
      %943 = vst [vmem:[#allocation2 + $0xb8] sm:$0xff] %v937
      %s944 = scalar_lea.vmem %s4, 192
      %v945 = vld [vmem:[%s944] sm:$0xf]
      %v946 = vld [vmem:[%s944 + $0x4] sm:$0xf]
      %v947 = vld [vmem:[%s944 + $0x8] sm:$0xf]
      %v948 = vld [vmem:[%s944 + $0xc] sm:$0xf]
      %v949 = vld [vmem:[%s944 + $0x10] sm:$0xf]
      %v950 = vld [vmem:[%s944 + $0x14] sm:$0xf]
      %v951 = vld [vmem:[%s944 + $0x18] sm:$0xf]
      %v952 = vld [vmem:[%s944 + $0x1c] sm:$0xf]
      %v961 = vunpack.c.l.b16 %v945
      %v962 = vunpack.c.l.b16 %v946
      %v963 = vunpack.c.l.b16 %v947
      %v964 = vunpack.c.l.b16 %v948
      %v965 = vunpack.c.l.b16 %v949
      %v966 = vunpack.c.l.b16 %v950
      %v967 = vunpack.c.l.b16 %v951
      %v968 = vunpack.c.l.b16 %v952
      %v969 = vpack.c.b16 %v962, %v961
      %v970 = vpack.c.b16 %v964, %v963
      %v971 = vpack.c.b16 %v966, %v965
      %v972 = vpack.c.b16 %v968, %v967
      %977 = vmatprep.subr.bf16.mxu0 0
      %978 = vmatpush1.bf16.msra.mxu0 %v969
      %979 = vmatprep.subr.bf16.mxu0 0
      %980 = vmatpush1.bf16.msra.mxu0 %v970
      %981 = vmatprep.subr.bf16.mxu0 0
      %982 = vmatpush1.bf16.msra.mxu0 %v971
      %983 = vmatprep.subr.bf16.mxu0 0
      %984 = vmatpush1.bf16.msra.mxu0 %v972
      %985 = vmatprep.subr.bf16.mxu0 0
      %986 = vmatpush1.bf16.msra.mxu0 0
      %987 = vmatprep.subr.bf16.mxu0 0
      %988 = vmatpush1.bf16.msra.mxu0 0
      %989 = vmatprep.subr.bf16.mxu0 0
      %990 = vmatpush1.bf16.msra.mxu0 0
      %991 = vmatprep.subr.bf16.mxu0 0
      %992 = vmatpush1.bf16.msra.mxu0 0
      %993 = vmatprep.subr.bf16.mxu0 0
      %994 = vmatpush1.bf16.msra.mxu0 0
      %995 = vmatprep.subr.bf16.mxu0 0
      %996 = vmatpush1.bf16.msra.mxu0 0
      %997 = vmatprep.subr.bf16.mxu0 0
      %998 = vmatpush1.bf16.msra.mxu0 0
      %999 = vmatprep.subr.bf16.mxu0 0
      %1000 = vmatpush1.bf16.msra.mxu0 0
      %1001 = vmatprep.subr.bf16.mxu0 0
      %1002 = vmatpush1.bf16.msra.mxu0 0
      %1003 = vmatprep.subr.bf16.mxu0 0
      %1004 = vmatpush1.bf16.msra.mxu0 0
      %1005 = vmatprep.subr.bf16.mxu0 0
      %1006 = vmatpush1.bf16.msra.mxu0 0
      %1007 = vmatprep.subr.bf16.mxu0 0
      %1008 = vmatpush1.bf16.msra.mxu0 0
      %1009 = vmatprep.mubr.bf16.mxu0 0
      %1010 = vmatmul.mubr.bf16.gmra.mrb[0].mxu0 %v456
      %v1011 = vpop.f32.mrb[0].mxu0
      %v1012 = vadd.f32 0.0, %v1011
      %v1013 = vpop.f32.mrb[0].mxu0
      %v1014 = vpop.f32.mrb[0].mxu0
      %v1015 = vadd.f32 0.0, %v1014
      %v1016 = vpop.f32.mrb[0].mxu0
      %1017 = vmatprep.mubr.bf16.mxu0 0
      %1018 = vmatmul.mubr.bf16.gmra.mrb[0].mxu0 %v459
      %v1019 = vpop.f32.mrb[0].mxu0
      %v1020 = vadd.f32 0.0, %v1019
      %v1021 = vpop.f32.mrb[0].mxu0
      %v1022 = vpop.f32.mrb[0].mxu0
      %v1023 = vadd.f32 0.0, %v1022
      %v1024 = vpop.f32.mrb[0].mxu0
      %1025 = vdwg.mxu0
      %1026 = vst [vmem:[#allocation2 + $0xc0] sm:$0xff] %v1012
      %1027 = vst [vmem:[#allocation2 + $0xc8] sm:$0xff] %v1015
      %1028 = vst [vmem:[#allocation2 + $0xd0] sm:$0xff] %v1020
      %1029 = vst [vmem:[#allocation2 + $0xd8] sm:$0xff] %v1023
      %s1030 = scalar_lea.vmem %s4, 224
      %v1031 = vld [vmem:[%s1030] sm:$0xf]
      %v1032 = vld [vmem:[%s1030 + $0x4] sm:$0xf]
      %v1033 = vld [vmem:[%s1030 + $0x8] sm:$0xf]
      %v1034 = vld [vmem:[%s1030 + $0xc] sm:$0xf]
      %v1035 = vld [vmem:[%s1030 + $0x10] sm:$0xf]
      %v1036 = vld [vmem:[%s1030 + $0x14] sm:$0xf]
      %v1037 = vld [vmem:[%s1030 + $0x18] sm:$0xf]
      %v1038 = vld [vmem:[%s1030 + $0x1c] sm:$0xf]
      %v1047 = vunpack.c.l.b16 %v1031
      %v1048 = vunpack.c.l.b16 %v1032
      %v1049 = vunpack.c.l.b16 %v1033
      %v1050 = vunpack.c.l.b16 %v1034
      %v1051 = vunpack.c.l.b16 %v1035
      %v1052 = vunpack.c.l.b16 %v1036
      %v1053 = vunpack.c.l.b16 %v1037
      %v1054 = vunpack.c.l.b16 %v1038
      %v1055 = vpack.c.b16 %v1048, %v1047
      %v1056 = vpack.c.b16 %v1050, %v1049
      %v1057 = vpack.c.b16 %v1052, %v1051
      %v1058 = vpack.c.b16 %v1054, %v1053
      %1063 = vmatprep.subr.bf16.mxu0 0
      %1064 = vmatpush1.bf16.msra.mxu0 %v1055
      %1065 = vmatprep.subr.bf16.mxu0 0
      %1066 = vmatpush1.bf16.msra.mxu0 %v1056
      %1067 = vmatprep.subr.bf16.mxu0 0
      %1068 = vmatpush1.bf16.msra.mxu0 %v1057
      %1069 = vmatprep.subr.bf16.mxu0 0
      %1070 = vmatpush1.bf16.msra.mxu0 %v1058
      %1071 = vmatprep.subr.bf16.mxu0 0
      %1072 = vmatpush1.bf16.msra.mxu0 0
      %1073 = vmatprep.subr.bf16.mxu0 0
      %1074 = vmatpush1.bf16.msra.mxu0 0
      %1075 = vmatprep.subr.bf16.mxu0 0
      %1076 = vmatpush1.bf16.msra.mxu0 0
      %1077 = vmatprep.subr.bf16.mxu0 0
      %1078 = vmatpush1.bf16.msra.mxu0 0
      %1079 = vmatprep.subr.bf16.mxu0 0
      %1080 = vmatpush1.bf16.msra.mxu0 0
      %1081 = vmatprep.subr.bf16.mxu0 0
      %1082 = vmatpush1.bf16.msra.mxu0 0
      %1083 = vmatprep.subr.bf16.mxu0 0
      %1084 = vmatpush1.bf16.msra.mxu0 0
      %1085 = vmatprep.subr.bf16.mxu0 0
      %1086 = vmatpush1.bf16.msra.mxu0 0
      %1087 = vmatprep.subr.bf16.mxu0 0
      %1088 = vmatpush1.bf16.msra.mxu0 0
      %1089 = vmatprep.subr.bf16.mxu0 0
      %1090 = vmatpush1.bf16.msra.mxu0 0
      %1091 = vmatprep.subr.bf16.mxu0 0
      %1092 = vmatpush1.bf16.msra.mxu0 0
      %1093 = vmatprep.subr.bf16.mxu0 0
      %1094 = vmatpush1.bf16.msra.mxu0 0
      %1095 = vmatprep.mubr.bf16.mxu0 0
      %1096 = vmatmul.mubr.bf16.gmra.mrb[0].mxu0 %v456
      %v1097 = vpop.f32.mrb[0].mxu0
      %v1098 = vadd.f32 0.0, %v1097
      %v1099 = vpop.f32.mrb[0].mxu0
      %v1100 = vpop.f32.mrb[0].mxu0
      %v1101 = vadd.f32 0.0, %v1100
      %v1102 = vpop.f32.mrb[0].mxu0
      %1103 = vmatprep.mubr.bf16.mxu0 0
      %1104 = vmatmul.mubr.bf16.gmra.mrb[0].mxu0 %v459
      %v1105 = vpop.f32.mrb[0].mxu0
      %v1106 = vadd.f32 0.0, %v1105
      %v1107 = vpop.f32.mrb[0].mxu0
      %v1108 = vpop.f32.mrb[0].mxu0
      %v1109 = vadd.f32 0.0, %v1108
      %v1110 = vpop.f32.mrb[0].mxu0
      %1111 = vdwg.mxu0
      %1112 = vst [vmem:[#allocation2 + $0xe0] sm:$0xff] %v1098
      %1113 = vst [vmem:[#allocation2 + $0xe8] sm:$0xff] %v1101
      %1114 = vst [vmem:[#allocation2 + $0xf0] sm:$0xff] %v1106
      %1115 = vst [vmem:[#allocation2 + $0xf8] sm:$0xff] %v1109
      %s1116 = scalar_lea.vmem %s4, 256
      %v1117 = vld [vmem:[%s1116] sm:$0xf]
      %v1118 = vld [vmem:[%s1116 + $0x4] sm:$0xf]
      %v1119 = vld [vmem:[%s1116 + $0x8] sm:$0xf]
      %v1120 = vld [vmem:[%s1116 + $0xc] sm:$0xf]
      %v1121 = vld [vmem:[%s1116 + $0x10] sm:$0xf]
      %v1122 = vld [vmem:[%s1116 + $0x14] sm:$0xf]
      %v1123 = vld [vmem:[%s1116 + $0x18] sm:$0xf]
      %v1124 = vld [vmem:[%s1116 + $0x1c] sm:$0xf]
      %v1133 = vunpack.c.l.b16 %v1117
      %v1134 = vunpack.c.l.b16 %v1118
      %v1135 = vunpack.c.l.b16 %v1119
      %v1136 = vunpack.c.l.b16 %v1120
      %v1137 = vunpack.c.l.b16 %v1121
      %v1138 = vunpack.c.l.b16 %v1122
      %v1139 = vunpack.c.l.b16 %v1123
      %v1140 = vunpack.c.l.b16 %v1124
      %v1141 = vpack.c.b16 %v1134, %v1133
      %v1142 = vpack.c.b16 %v1136, %v1135
      %v1143 = vpack.c.b16 %v1138, %v1137
      %v1144 = vpack.c.b16 %v1140, %v1139
      %1149 = vmatprep.subr.bf16.mxu0 0
      %1150 = vmatpush1.bf16.msra.mxu0 %v1141
      %1151 = vmatprep.subr.bf16.mxu0 0
      %1152 = vmatpush1.bf16.msra.mxu0 %v1142
      %1153 = vmatprep.subr.bf16.mxu0 0
      %1154 = vmatpush1.bf16.msra.mxu0 %v1143
      %1155 = vmatprep.subr.bf16.mxu0 0
      %1156 = vmatpush1.bf16.msra.mxu0 %v1144
      %1157 = vmatprep.subr.bf16.mxu0 0
      %1158 = vmatpush1.bf16.msra.mxu0 0
      %1159 = vmatprep.subr.bf16.mxu0 0
      %1160 = vmatpush1.bf16.msra.mxu0 0
      %1161 = vmatprep.subr.bf16.mxu0 0
      %1162 = vmatpush1.bf16.msra.mxu0 0
      %1163 = vmatprep.subr.bf16.mxu0 0
      %1164 = vmatpush1.bf16.msra.mxu0 0
      %1165 = vmatprep.subr.bf16.mxu0 0
      %1166 = vmatpush1.bf16.msra.mxu0 0
      %1167 = vmatprep.subr.bf16.mxu0 0
      %1168 = vmatpush1.bf16.msra.mxu0 0
      %1169 = vmatprep.subr.bf16.mxu0 0
      %1170 = vmatpush1.bf16.msra.mxu0 0
      %1171 = vmatprep.subr.bf16.mxu0 0
      %1172 = vmatpush1.bf16.msra.mxu0 0
      %1173 = vmatprep.subr.bf16.mxu0 0
      %1174 = vmatpush1.bf16.msra.mxu0 0
      %1175 = vmatprep.subr.bf16.mxu0 0
      %1176 = vmatpush1.bf16.msra.mxu0 0
      %1177 = vmatprep.subr.bf16.mxu0 0
      %1178 = vmatpush1.bf16.msra.mxu0 0
      %1179 = vmatprep.subr.bf16.mxu0 0
      %1180 = vmatpush1.bf16.msra.mxu0 0
      %1181 = vmatprep.mubr.bf16.mxu0 0
      %1182 = vmatmul.mubr.bf16.gmra.mrb[0].mxu0 %v456
      %v1183 = vpop.f32.mrb[0].mxu0
      %v1184 = vadd.f32 0.0, %v1183
      %v1185 = vpop.f32.mrb[0].mxu0
      %v1186 = vpop.f32.mrb[0].mxu0
      %v1187 = vadd.f32 0.0, %v1186
      %v1188 = vpop.f32.mrb[0].mxu0
      %1189 = vmatprep.mubr.bf16.mxu0 0
      %1190 = vmatmul.mubr.bf16.gmra.mrb[0].mxu0 %v459
      %v1191 = vpop.f32.mrb[0].mxu0
      %v1192 = vadd.f32 0.0, %v1191
      %v1193 = vpop.f32.mrb[0].mxu0
      %v1194 = vpop.f32.mrb[0].mxu0
      %v1195 = vadd.f32 0.0, %v1194
      %v1196 = vpop.f32.mrb[0].mxu0
      %1197 = vdwg.mxu0
      %1198 = vst [vmem:[#allocation2 + $0x100] sm:$0xff] %v1184
      %1199 = vst [vmem:[#allocation2 + $0x108] sm:$0xff] %v1187
      %1200 = vst [vmem:[#allocation2 + $0x110] sm:$0xff] %v1192
      %1201 = vst [vmem:[#allocation2 + $0x118] sm:$0xff] %v1195
      %v1202 = vld [vmem:[%s5] sm:$0xff]
      %v1203 = vld [vmem:[%s5 + $0x8] sm:$0xff]
      %v1204 = vld [vmem:[%s5 + $0x10] sm:$0xff]
      %v1205 = vld [vmem:[%s5 + $0x18] sm:$0xff]
      %v1206 = vld [vmem:[%s5 + $0x20] sm:$0xff]
      %v1207 = vld [vmem:[%s5 + $0x28] sm:$0xff]
      %v1208 = vld [vmem:[%s5 + $0x30] sm:$0xff]
      %v1209 = vld [vmem:[%s5 + $0x38] sm:$0xff]
      %v1210 = vld [vmem:[%s5 + $0x40] sm:$0xff]
      %v1211 = vld [vmem:[%s5 + $0x48] sm:$0xff]
      %v1212 = vld [vmem:[%s5 + $0x50] sm:$0xff]
      %v1213 = vld [vmem:[%s5 + $0x58] sm:$0xff]
      %v1214 = vld [vmem:[#allocation2] sm:$0xff]
      %v1215 = vld [vmem:[#allocation2 + $0x8] sm:$0xff]
      %v1216 = vld [vmem:[#allocation2 + $0x10] sm:$0xff]
      %v1217 = vld [vmem:[#allocation2 + $0x18] sm:$0xff]
      %v1218 = vld [vmem:[#allocation2 + $0x20] sm:$0xff]
      %v1219 = vld [vmem:[#allocation2 + $0x28] sm:$0xff]
      %v1220 = vld [vmem:[#allocation2 + $0x30] sm:$0xff]
      %v1221 = vld [vmem:[#allocation2 + $0x38] sm:$0xff]
      %v1222 = vld [vmem:[#allocation2 + $0x40] sm:$0xff]
      %v1223 = vld [vmem:[#allocation2 + $0x48] sm:$0xff]
      %v1224 = vld [vmem:[#allocation2 + $0x50] sm:$0xff]
      %v1225 = vld [vmem:[#allocation2 + $0x58] sm:$0xff]
      %v1226 = vld [vmem:[#allocation2 + $0x60] sm:$0xff]
      %v1227 = vld [vmem:[#allocation2 + $0x68] sm:$0xff]
      %v1228 = vld [vmem:[#allocation2 + $0x70] sm:$0xff]
      %v1229 = vld [vmem:[#allocation2 + $0x78] sm:$0xff]
      %v1230 = vld [vmem:[#allocation2 + $0x80] sm:$0xff]
      %v1231 = vld [vmem:[#allocation2 + $0x88] sm:$0xff]
      %v1232 = vld [vmem:[#allocation2 + $0x90] sm:$0xff]
      %v1233 = vld [vmem:[#allocation2 + $0x98] sm:$0xff]
      %v1234 = vld [vmem:[#allocation2 + $0xa0] sm:$0xff]
      %v1235 = vld [vmem:[#allocation2 + $0xa8] sm:$0xff]
      %v1236 = vld [vmem:[#allocation2 + $0xb0] sm:$0xff]
      %v1237 = vld [vmem:[#allocation2 + $0xb8] sm:$0xff]
      %v1238 = vld [vmem:[#allocation2 + $0xc0] sm:$0xff]
      %v1239 = vld [vmem:[#allocation2 + $0xc8] sm:$0xff]
      %v1240 = vld [vmem:[#allocation2 + $0xd0] sm:$0xff]
      %v1241 = vld [vmem:[#allocation2 + $0xd8] sm:$0xff]
      %v1242 = vld [vmem:[#allocation2 + $0xe0] sm:$0xff]
      %v1243 = vld [vmem:[#allocation2 + $0xe8] sm:$0xff]
      %v1244 = vld [vmem:[#allocation2 + $0xf0] sm:$0xff]
      %v1245 = vld [vmem:[#allocation2 + $0xf8] sm:$0xff]
      %v1246 = vld [vmem:[#allocation2 + $0x100] sm:$0xff]
      %v1247 = vld [vmem:[#allocation2 + $0x108] sm:$0xff]
      %v1248 = vld [vmem:[#allocation2 + $0x110] sm:$0xff]
      %v1249 = vld [vmem:[#allocation2 + $0x118] sm:$0xff]
      %v1250 = vld [vmem:[%s6] sm:$0x1]
      %v1252 = vlaneseq
      %v1253 = vshrl.u32 %v1252, 7
      %v1254 = vsub.s32 0, %v1253
      %v1255 = vrot.slane %v1250, %v1254
      %vm1257 = vcmask 261120
      %v1259 = vsel %vm1257, %v1204, 0
      %v1262 = vsel %vm1257, %v1207, 0
      %v1265 = vsel %vm1257, %v1210, 0
      %v1268 = vsel %vm1257, %v1213, 0
      %1270 = vmatprep.subr.mxu0 0.0
      %1271 = vmatpush1.msra.mxu0 %v1214
      %1272 = vmatprep.subr.mxu0 0.0
      %1273 = vmatpush1.msra.mxu0 %v1215
      %1274 = vmatprep.subr.mxu0 0.0
      %1275 = vmatpush1.msra.mxu0 %v1216
      %1276 = vmatprep.subr.mxu0 0.0
      %1277 = vmatpush1.msra.mxu0 %v1217
      %1278 = vmatprep.subr.mxu0 0.0
      %1279 = vmatpush1.msra.mxu0 %v1218
      %1280 = vmatprep.subr.mxu0 0.0
      %1281 = vmatpush1.msra.mxu0 %v1219
      %1282 = vmatprep.subr.mxu0 0.0
      %1283 = vmatpush1.msra.mxu0 %v1220
      %1284 = vmatprep.subr.mxu0 0.0
      %1285 = vmatpush1.msra.mxu0 %v1221
      %1286 = vmatprep.subr.mxu0 0.0
      %1287 = vmatpush1.msra.mxu0 %v1222
      %1288 = vmatprep.subr.mxu0 0.0
      %1289 = vmatpush1.msra.mxu0 %v1223
      %1290 = vmatprep.subr.mxu0 0.0
      %1291 = vmatpush1.msra.mxu0 %v1224
      %1292 = vmatprep.subr.mxu0 0.0
      %1293 = vmatpush1.msra.mxu0 %v1225
      %1294 = vmatprep.subr.mxu0 0.0
      %1295 = vmatpush1.msra.mxu0 %v1226
      %1296 = vmatprep.subr.mxu0 0.0
      %1297 = vmatpush1.msra.mxu0 %v1227
      %1298 = vmatprep.subr.mxu0 0.0
      %1299 = vmatpush1.msra.mxu0 %v1228
      %1300 = vmatprep.subr.mxu0 0.0
      %1301 = vmatpush1.msra.mxu0 %v1229
      %1302 = vmatprep.subr.mxu0 0.0
      %1303 = vmatpush1.msra.mxu0 %v1230
      %1304 = vmatprep.subr.mxu0 0.0
      %1305 = vmatpush1.msra.mxu0 %v1231
      %1306 = vmatprep.subr.mxu0 0.0
      %1307 = vmatpush1.msra.mxu0 %v1232
      %1308 = vmatprep.subr.mxu0 0.0
      %1309 = vmatpush1.msra.mxu0 %v1233
      %1310 = vmatprep.subr.mxu0 0.0
      %1311 = vmatpush1.msra.mxu0 %v1234
      %1312 = vmatprep.subr.mxu0 0.0
      %1313 = vmatpush1.msra.mxu0 %v1235
      %1314 = vmatprep.subr.mxu0 0.0
      %1315 = vmatpush1.msra.mxu0 %v1236
      %1316 = vmatprep.subr.mxu0 0.0
      %1317 = vmatpush1.msra.mxu0 %v1237
      %1318 = vmatprep.subr.mxu0 0.0
      %1319 = vmatpush1.msra.mxu0 %v1238
      %1320 = vmatprep.subr.mxu0 0.0
      %1321 = vmatpush1.msra.mxu0 %v1239
      %1322 = vmatprep.subr.mxu0 0.0
      %1323 = vmatpush1.msra.mxu0 %v1240
      %1324 = vmatprep.subr.mxu0 0.0
      %1325 = vmatpush1.msra.mxu0 %v1241
      %1326 = vmatprep.subr.mxu0 0.0
      %1327 = vmatpush1.msra.mxu0 %v1242
      %1328 = vmatprep.subr.mxu0 0.0
      %1329 = vmatpush1.msra.mxu0 %v1243
      %1330 = vmatprep.subr.mxu0 0.0
      %1331 = vmatpush1.msra.mxu0 %v1244
      %1332 = vmatprep.subr.mxu0 0.0
      %1333 = vmatpush1.msra.mxu0 %v1245
      %1334 = vmatprep.mubr.f32.mxu0 %v1203
      %1335 = vmatmul.mubr.f32.gmra.mrb[0].mxu0 %v1202
      %v1336 = vpop.f32.mrb[0].mxu0
      %v1337 = vadd.f32 %v1255, %v1336
      %v1338 = vpop.f32.mrb[0].mxu0
      %1339 = vmatprep.mubr.f32.mxu0 %v1206
      %1340 = vmatmul.mubr.f32.gmra.mrb[0].mxu0 %v1205
      %v1341 = vpop.f32.mrb[0].mxu0
      %v1342 = vadd.f32 %v1255, %v1341
      %v1343 = vpop.f32.mrb[0].mxu0
      %1344 = vmatprep.mubr.f32.mxu0 %v1209
      %1345 = vmatmul.mubr.f32.gmra.mrb[0].mxu0 %v1208
      %v1346 = vpop.f32.mrb[0].mxu0
      %v1347 = vadd.f32 %v1255, %v1346
      %v1348 = vpop.f32.mrb[0].mxu0
      %1349 = vmatprep.mubr.f32.mxu0 %v1212
      %1350 = vmatmul.mubr.f32.gmra.mrb[0].mxu0 %v1211
      %v1351 = vpop.f32.mrb[0].mxu0
      %v1352 = vadd.f32 %v1255, %v1351
      %v1353 = vpop.f32.mrb[0].mxu0
      %1354 = vdwg.mxu0
      %1355 = vmatprep.subr.mxu0 0.0
      %1356 = vmatpush1.msra.mxu0 %v1246
      %1357 = vmatprep.subr.mxu0 0.0
      %1358 = vmatpush1.msra.mxu0 %v1247
      %1359 = vmatprep.subr.mxu0 0.0
      %1360 = vmatpush1.msra.mxu0 %v1248
      %1361 = vmatprep.subr.mxu0 0.0
      %1362 = vmatpush1.msra.mxu0 %v1249
      %1363 = vmatprep.subr.mxu0 0.0
      %1364 = vmatpush1.msra.mxu0 0.0
      %1365 = vmatprep.subr.mxu0 0.0
      %1366 = vmatpush1.msra.mxu0 0.0
      %1367 = vmatprep.subr.mxu0 0.0
      %1368 = vmatpush1.msra.mxu0 0.0
      %1369 = vmatprep.subr.mxu0 0.0
      %1370 = vmatpush1.msra.mxu0 0.0
      %1371 = vmatprep.subr.mxu0 0.0
      %1372 = vmatpush1.msra.mxu0 0.0
      %1373 = vmatprep.subr.mxu0 0.0
      %1374 = vmatpush1.msra.mxu0 0.0
      %1375 = vmatprep.subr.mxu0 0.0
      %1376 = vmatpush1.msra.mxu0 0.0
      %1377 = vmatprep.subr.mxu0 0.0
      %1378 = vmatpush1.msra.mxu0 0.0
      %1379 = vmatprep.subr.mxu0 0.0
      %1380 = vmatpush1.msra.mxu0 0.0
      %1381 = vmatprep.subr.mxu0 0.0
      %1382 = vmatpush1.msra.mxu0 0.0
      %1383 = vmatprep.subr.mxu0 0.0
      %1384 = vmatpush1.msra.mxu0 0.0
      %1385 = vmatprep.subr.mxu0 0.0
      %1386 = vmatpush1.msra.mxu0 0.0
      %1387 = vmatprep.subr.mxu0 0.0
      %1388 = vmatpush1.msra.mxu0 0.0
      %1389 = vmatprep.subr.mxu0 0.0
      %1390 = vmatpush1.msra.mxu0 0.0
      %1391 = vmatprep.subr.mxu0 0.0
      %1392 = vmatpush1.msra.mxu0 0.0
      %1393 = vmatprep.subr.mxu0 0.0
      %1394 = vmatpush1.msra.mxu0 0.0
      %1395 = vmatprep.subr.mxu0 0.0
      %1396 = vmatpush1.msra.mxu0 0.0
      %1397 = vmatprep.subr.mxu0 0.0
      %1398 = vmatpush1.msra.mxu0 0.0
      %1399 = vmatprep.subr.mxu0 0.0
      %1400 = vmatpush1.msra.mxu0 0.0
      %1401 = vmatprep.subr.mxu0 0.0
      %1402 = vmatpush1.msra.mxu0 0.0
      %1403 = vmatprep.subr.mxu0 0.0
      %1404 = vmatpush1.msra.mxu0 0.0
      %1405 = vmatprep.subr.mxu0 0.0
      %1406 = vmatpush1.msra.mxu0 0.0
      %1407 = vmatprep.subr.mxu0 0.0
      %1408 = vmatpush1.msra.mxu0 0.0
      %1409 = vmatprep.subr.mxu0 0.0
      %1410 = vmatpush1.msra.mxu0 0.0
      %1411 = vmatprep.subr.mxu0 0.0
      %1412 = vmatpush1.msra.mxu0 0.0
      %1413 = vmatprep.subr.mxu0 0.0
      %1414 = vmatpush1.msra.mxu0 0.0
      %1415 = vmatprep.subr.mxu0 0.0
      %1416 = vmatpush1.msra.mxu0 0.0
      %1417 = vmatprep.subr.mxu0 0.0
      %1418 = vmatpush1.msra.mxu0 0.0
      %1419 = vmatprep.mubr.f32.mxu0 0.0
      %1420 = vmatmul.mubr.f32.gmra.mrb[0].mxu0 %v1259
      %v1421 = vpop.f32.mrb[0].mxu0
      %v1422 = vadd.f32 %v1337, %v1421
      %v1423 = vpop.f32.mrb[0].mxu0
      %1424 = vmatprep.mubr.f32.mxu0 0.0
      %1425 = vmatmul.mubr.f32.gmra.mrb[0].mxu0 %v1262
      %v1426 = vpop.f32.mrb[0].mxu0
      %v1427 = vadd.f32 %v1342, %v1426
      %v1428 = vpop.f32.mrb[0].mxu0
      %1429 = vmatprep.mubr.f32.mxu0 0.0
      %1430 = vmatmul.mubr.f32.gmra.mrb[0].mxu0 %v1265
      %v1431 = vpop.f32.mrb[0].mxu0
      %v1432 = vadd.f32 %v1347, %v1431
      %v1433 = vpop.f32.mrb[0].mxu0
      %1434 = vmatprep.mubr.f32.mxu0 0.0
      %1435 = vmatmul.mubr.f32.gmra.mrb[0].mxu0 %v1268
      %v1436 = vpop.f32.mrb[0].mxu0
      %v1437 = vadd.f32 %v1352, %v1436
      %v1438 = vpop.f32.mrb[0].mxu0
      %1439 = vdwg.mxu0
      %v1440 = vmax.f32 %v1422, 0.0
      %v1441 = vmax.f32 %v1427, 0.0
      %v1442 = vmax.f32 %v1432, 0.0
      %v1443 = vmax.f32 %v1437, 0.0
      %v1444 = vld [vmem:[%s3] sm:$0xf]
      %v1445 = vld [vmem:[%s3 + $0x4] sm:$0xf]
      %v1446 = vld [vmem:[%s3 + $0x8] sm:$0xf]
      %v1447 = vld [vmem:[%s3 + $0xc] sm:$0xf]
      %v1448 = vld [vmem:[%s3 + $0x10] sm:$0xf]
      %v1449 = vld [vmem:[%s3 + $0x14] sm:$0xf]
      %v1450 = vld [vmem:[%s3 + $0x18] sm:$0xf]
      %v1451 = vld [vmem:[%s3 + $0x1c] sm:$0xf]
      %v1452 = vld [vmem:[%s3 + $0x20] sm:$0xf]
      %v1453 = vld [vmem:[%s3 + $0x24] sm:$0xf]
      %v1454 = vld [vmem:[%s3 + $0x28] sm:$0xf]
      %v1455 = vld [vmem:[%s3 + $0x2c] sm:$0xf]
      %v1456 = vld [vmem:[%s3 + $0x30] sm:$0xf]
      %v1457 = vld [vmem:[%s3 + $0x34] sm:$0xf]
      %v1458 = vld [vmem:[%s3 + $0x38] sm:$0xf]
      %v1459 = vld [vmem:[%s3 + $0x3c] sm:$0xf]
      %v1476 = vunpack.c.l.b16 %v1444
      %v1477 = vunpack.c.l.b16 %v1445
      %v1478 = vunpack.c.l.b16 %v1446
      %v1479 = vunpack.c.l.b16 %v1447
      %v1480 = vunpack.c.l.b16 %v1448
      %v1481 = vunpack.c.l.b16 %v1449
      %v1482 = vunpack.c.l.b16 %v1450
      %v1483 = vunpack.c.l.b16 %v1451
      %v1484 = vunpack.c.l.b16 %v1452
      %v1485 = vunpack.c.l.b16 %v1453
      %v1486 = vunpack.c.l.b16 %v1454
      %v1487 = vunpack.c.l.b16 %v1455
      %v1488 = vunpack.c.l.b16 %v1456
      %v1489 = vunpack.c.l.b16 %v1457
      %v1490 = vunpack.c.l.b16 %v1458
      %v1491 = vunpack.c.l.b16 %v1459
      %v1492 = vpack.c.b16 %v1477, %v1476
      %v1493 = vpack.c.b16 %v1479, %v1478
      %v1494 = vpack.c.b16 %v1481, %v1480
      %v1495 = vpack.c.b16 %v1483, %v1482
      %v1496 = vpack.c.b16 %v1485, %v1484
      %v1497 = vpack.c.b16 %v1487, %v1486
      %v1498 = vpack.c.b16 %v1489, %v1488
      %v1499 = vpack.c.b16 %v1491, %v1490
      %1508 = vmatprep.subr.bf16.mxu0 0
      %1509 = vmatpush1.bf16.msra.mxu0 %v1492
      %1510 = vmatprep.subr.bf16.mxu0 0
      %1511 = vmatpush1.bf16.msra.mxu0 %v1493
      %1512 = vmatprep.subr.bf16.mxu0 0
      %1513 = vmatpush1.bf16.msra.mxu0 %v1494
      %1514 = vmatprep.subr.bf16.mxu0 0
      %1515 = vmatpush1.bf16.msra.mxu0 %v1495
      %1516 = vmatprep.subr.bf16.mxu0 0
      %1517 = vmatpush1.bf16.msra.mxu0 %v1496
      %1518 = vmatprep.subr.bf16.mxu0 0
      %1519 = vmatpush1.bf16.msra.mxu0 %v1497
      %1520 = vmatprep.subr.bf16.mxu0 0
      %1521 = vmatpush1.bf16.msra.mxu0 %v1498
      %1522 = vmatprep.subr.bf16.mxu0 0
      %1523 = vmatpush1.bf16.msra.mxu0 %v1499
      %1524 = vmatprep.subr.bf16.mxu0 0
      %1525 = vmatpush1.bf16.msra.mxu0 0
      %1526 = vmatprep.subr.bf16.mxu0 0
      %1527 = vmatpush1.bf16.msra.mxu0 0
      %1528 = vmatprep.subr.bf16.mxu0 0
      %1529 = vmatpush1.bf16.msra.mxu0 0
      %1530 = vmatprep.subr.bf16.mxu0 0
      %1531 = vmatpush1.bf16.msra.mxu0 0
      %1532 = vmatprep.subr.bf16.mxu0 0
      %1533 = vmatpush1.bf16.msra.mxu0 0
      %1534 = vmatprep.subr.bf16.mxu0 0
      %1535 = vmatpush1.bf16.msra.mxu0 0
      %1536 = vmatprep.subr.bf16.mxu0 0
      %1537 = vmatpush1.bf16.msra.mxu0 0
      %1538 = vmatprep.subr.bf16.mxu0 0
      %1539 = vmatpush1.bf16.msra.mxu0 0
      %1540 = vmatprep.mubr.bf16.mxu0 0
      %1541 = vmatmul.mubr.bf16.gmra.mrb[0].mxu0 %v315
      %v1542 = vpop.f32.mrb[0].mxu0
      %v1543 = vadd.f32 %v1440, %v1542
      %v1544 = vpop.f32.mrb[0].mxu0
      %v1545 = vpop.f32.mrb[0].mxu0
      %v1546 = vadd.f32 %v1441, %v1545
      %v1547 = vpop.f32.mrb[0].mxu0
      %1548 = vmatprep.mubr.bf16.mxu0 0
      %1549 = vmatmul.mubr.bf16.gmra.mrb[0].mxu0 %v316
      %v1550 = vpop.f32.mrb[0].mxu0
      %v1551 = vadd.f32 %v1442, %v1550
      %v1552 = vpop.f32.mrb[0].mxu0
      %v1553 = vpop.f32.mrb[0].mxu0
      %v1554 = vadd.f32 %v1443, %v1553
      %v1555 = vpop.f32.mrb[0].mxu0
      %1556 = vdwg.mxu0
      %1557 = vst [vmem:[%s278] sm:$0xff] %v1543
      %1558 = vst [vmem:[%s278 + $0x8] sm:$0xff] %v1546
      %1559 = vst [vmem:[%s278 + $0x10] sm:$0xff] %v1551
      %1560 = vst [vmem:[%s278 + $0x18] sm:$0xff] %v1554
      %p1561 = scmp.lt.s32.totalorder %s18, 1
      %s1562 = scalar_select %p1561, %s18, 1
      %s1563 = smul.addr %s1562, 4
      %s1564 = smul.addr %s1563, 8
      %s1565 = scalar_lea.vmem %s7, %s1564
      // Predicated region
      $region49: #{a_call__.1} parent=47 // pred_check
        %p1566 = pneg %p188
      $region50: #{a_call__.1} parent=47 // pred_check_branch
        %1568 = sbr.rel (%p1566) target = $region52
      $region51: #{a_call__.1} parent=47 // pred_region
        _
      $region52: #{a_call__.1} parent=47 // pred_fallthru
        _
    $region48: #{a_call__.1} parent=5 // pred_fallthru
      _
    %p1569 = scmp.le.s32.totalorder 2, %s13
    // Predicated region
    $region53: #{a_call__.1} parent=5 // pred_check
      %p1570 = pneg %p1569
    $region54: #{a_call__.1} parent=5 // pred_check_branch
      %1572 = sbr.rel (%p1570) target = $region56
    $region55: #{a_call__.1} parent=5 // pred_region
      %s1573 = ssub.s32 %s13, 2
      // Predicated region
      $region57: #{a_call__.1} parent=55 // pred_check
        %p1574 = pneg %p194
      $region58: #{a_call__.1} parent=55 // pred_check_branch
        %1576 = sbr.rel (%p1574) target = $region60
      $region59: #{a_call__.1} parent=55 // pred_region
        %p1577 = scmp.lt.s32.totalorder %s19, 1
        %s1578 = scalar_select %p1577, %s19, 1
        %s1579 = smul.addr %s1578, 4
        %s1580 = smul.addr %s1579, 8
        %s1581 = scalar_lea.vmem %s7, %s1580
      $region60: #{a_call__.1} parent=55 // pred_fallthru
        _
    $region56: #{a_call__.1} parent=5 // pred_fallthru
      _
  $region6: #{a_call__.1} parent=0 // loop_footer
    %s17 = sadd.s32 1, %s13
  $region7: #{a_call__.1} parent=0 // loop_footer_branch
    %12 = sbr.rel target = $region3
  $region8: #{a_call__.1} parent=0 // loop_exit
    _

</llo_original>
